<compile_context>
chip_gen: v6e
topology: v6e:2x2x1
jax: 0.10.0
libtpu: 0.0.40
codegen_flags: <defaults>
</compile_context>

<pallas_src>
import numpy as np
import jax
import jax.numpy as jnp
from jax.experimental import pallas as pl
from jax.experimental.pallas import tpu as pltpu

NEG_SLOPE = 0.01   # nn.LeakyReLU() default negative_slope
H_PAD = 40         # input H padded 28 -> 40 so every conv1 tap reads a 32-row slab


def _leaky(x):
    return jnp.where(x >= 0, x, NEG_SLOPE * x)


# ---------------------------------------------------------------------------
# Fused Pallas kernel: whole CNN2 forward in one invocation.
#
# Activation layouts (all values, never stored to HBM/VMEM scratch):
#   x      : (B, 40, Cin*28)       lane = ci*28 + wi          (rows >=28 zero pad)
#   conv1  : (B, 32, 144)          lane = co*24 + wo          (rows >=24 junk)
#   pool1  : (B, 24, 143)          valid at even rows 2*h1 and even lanes co*24+2*w1
#   conv2  : (B, 16, 72)           lane = co2*8 + wo2         (valid at even rows)
#   pool2  : (B, 14, 71)           valid rows {0,4,8,12}, even lanes co2*8+2*w2
#   conv3  : (B, 54)               lane = co3*9 + oh*3 + ow   (== nn.Flatten NCHW)
# Junk rows/lanes are always finite and, because the banded weights are zero at
# odd lanes and matmuls never mix rows, they can never reach a valid output.
# ---------------------------------------------------------------------------
def _cnn2_kernel(x_ref, wb1_ref, b1_ref, wb2_ref, b2_ref, w3_ref, b3_ref,
                 w4_ref, b4_ref, w5_ref, b5_ref, out_ref):
    f32 = jnp.float32
    B = x_ref.shape[0]
    k1 = x_ref.shape[2]                      # Cin * 28

    # -------- conv1: 5 accumulating GEMMs (one per kernel row), banded over W --
    acc1 = jnp.zeros((B * 32, 144), f32)
    for i in range(5):
        lhs = x_ref[:, i:i + 32, :].reshape(B * 32, k1)
        acc1 = acc1 + jnp.dot(lhs, wb1_ref[i], preferred_element_type=f32)
    y1 = (acc1 + b1_ref[...]).reshape(B, 32, 144)

    # -------- maxpool(2,2) + LeakyReLU (pair-max; valid at even rows/lanes) ---
    m1 = jnp.maximum(y1[:, 0:24, :], y1[:, 1:25, :])       # H pairs
    m1 = jnp.maximum(m1[:, :, 0:143], m1[:, :, 1:144])     # W pairs (per co block)
    p1 = _leaky(m1)                                        # (B, 24, 143)

    # -------- conv2: 5 accumulating GEMMs, banded over W, even-lane weights ---
    acc2 = jnp.zeros((B * 16, 72), f32)
    for i in range(5):
        lhs = p1[:, 2 * i:2 * i + 16, :].reshape(B * 16, 143)
        acc2 = acc2 + jnp.dot(lhs, wb2_ref[i], preferred_element_type=f32)
    y2 = (acc2 + b2_ref[...]).reshape(B, 16, 72)

    # -------- maxpool(2,2) + LeakyReLU (valid conv2 rows sit at stride 2) -----
    m2 = jnp.maximum(y2[:, 0:14, :], y2[:, 2:16, :])       # H pairs
    m2 = jnp.maximum(m2[:, :, 0:71], m2[:, :, 1:72])       # W pairs
    p2 = _leaky(m2)                                        # (B, 14, 71)

    # -------- conv3 (2x2, 9->6) + LeakyReLU + Flatten (NCHW order) ------------
    acc3 = jnp.zeros((B, 54), f32)
    for h2 in range(4):                                    # one dot per input row
        acc3 = acc3 + jnp.dot(p2[:, 4 * h2, :], w3_ref[h2],
                              preferred_element_type=f32)
    h3 = _leaky(acc3 + b3_ref[...])                        # (B, 54)

    # -------- fc1 + LeakyReLU, fc2 --------------------------------------------
    h4 = _leaky(jnp.dot(h3, w4_ref[...], preferred_element_type=f32) + b4_ref[...])
    out = jnp.dot(h4, w5_ref[...], preferred_element_type=f32) + b5_ref[...]
    out_ref[...] = out.astype(out_ref.dtype)


# ---------------------------------------------------------------------------
# One-time (host side, numpy) weight repacking into banded GEMM form.
# Called ONCE, outside the jitted per-call path (review item).
# ---------------------------------------------------------------------------
def pack_params(params):
    g = lambda k: np.asarray(params[k], np.float32)
    w1, w2, w3 = g("conv1_w"), g("conv2_w"), g("conv3_w")
    cin = w1.shape[1]

    # conv1: (5, Cin*28, 6*24); input lane = ci*28+wi, output lane = co*24+wo.
    wb1 = np.zeros((5, cin * 28, 6 * 24), np.float32)
    wo = np.arange(24)
    for i in range(5):
        for j in range(5):
            for ci in range(cin):
                for co in range(6):
                    wb1[i, ci * 28 + wo + j, co * 24 + wo] = w1[co, ci, i, j]

    # conv2: (5, 143, 9*8); reads pool1's *uncompacted* lanes (ci*24 + 2*w1),
    # zero rows at odd lanes; output lane = co2*8 + wo2.
    wb2 = np.zeros((5, 143, 9 * 8), np.float32)
    wo2 = np.arange(8)
    for i in range(5):
        for j in range(5):
            for ci in range(6):
                for co in range(9):
                    wb2[i, ci * 24 + 2 * (wo2 + j), co * 8 + wo2] = w2[co, ci, i, j]

    # conv3+Flatten: (4, 71, 54) per input row h2; reads pool2's uncompacted
    # lanes (ci*8 + 2*w2); output lane = co*9 + oh*3 + ow == NCHW flatten order.
    w3u = np.zeros((4, 71, 54), np.float32)
    for h2 in range(4):
        for w2p in range(4):
            for ci in range(9):
                for co in range(6):
                    for dh in range(2):
                        for dw in range(2):
                            oh, ow = h2 - dh, w2p - dw
                            if 0 <= oh < 3 and 0 <= ow < 3:
                                w3u[h2, ci * 8 + 2 * w2p,
                                    co * 9 + oh * 3 + ow] = w3[co, ci, dh, dw]

    b1l = np.repeat(g("conv1_b"), 24)[None, :]            # (1, 144)
    b2l = np.repeat(g("conv2_b"), 8)[None, :]             # (1, 72)
    b3l = np.repeat(g("conv3_b"), 9)[None, :]             # (1, 54)
    w4 = np.ascontiguousarray(g("fc1_w").T)               # (54, 20)
    b4 = g("fc1_b")[None, :]
    w5 = np.ascontiguousarray(g("fc2_w").T)               # (20, 10)
    b5 = g("fc2_b")[None, :]

    packed = (wb1, b1l, wb2, b2l, w3u, b3l, w4, b4, w5, b5)
    return tuple(jnp.asarray(a) for a in packed)


# ---------------------------------------------------------------------------
# Wrapper: input layout change only (18 KB transpose + pad) + single pallas_call.
# ---------------------------------------------------------------------------
def _full_spec(shape):
    nd = len(shape)
    return pl.BlockSpec(shape, lambda i, _nd=nd: (0,) * _nd)


def cnn2_forward(packed, x):
    """Fused CNN2 forward.  x: (B, channels_in, 28, 28) float32 -> (B, 10)."""
    B, cin, H, W = x.shape
    assert (H, W) == (28, 28), "CNN2 requires 28x28 inputs (Linear(3*3*6, 20))"
    f32 = jnp.float32

    # (B, Cin, 28, 28) -> (B, 28, Cin*28): lane = ci*28 + wi; pad H rows to 40.
    xp = jnp.transpose(x.astype(f32), (0, 2, 1, 3)).reshape(B, 28, cin * 28)
    xp = jnp.pad(xp, ((0, 0), (0, H_PAD - 28), (0, 0)))

    args = (xp,) + tuple(packed)
    return pl.pallas_call(
        _cnn2_kernel,
        out_shape=jax.ShapeDtypeStruct((B, 10), f32),
        grid=(1,),
        in_specs=[_full_spec(a.shape) for a in args],
        out_specs=_full_spec((B, 10)),
        compiler_params=pltpu.CompilerParams(
            dimension_semantics=("arbitrary",)),
    )(*args)


# ---------------------------------------------------------------------------
# CNN2 parameters (init_type='uniform': weights ~ U(0,1), bias = 0.01)
# ---------------------------------------------------------------------------
def init_params(key, channels_in):
    ks = jax.random.split(key, 5)
    u = lambda k, s: jax.random.uniform(k, s, jnp.float32)
    return {
        "conv1_w": u(ks[0], (6, channels_in, 5, 5)),
        "conv1_b": jnp.full((6,), 0.01, jnp.float32),
        "conv2_w": u(ks[1], (9, 6, 5, 5)),
        "conv2_b": jnp.full((9,), 0.01, jnp.float32),
        "conv3_w": u(ks[2], (6, 9, 2, 2)),
        "conv3_b": jnp.full((6,), 0.01, jnp.float32),
        "fc1_w": u(ks[3], (20, 3 * 3 * 6)),
        "fc1_b": jnp.full((20,), 0.01, jnp.float32),
        "fc2_w": u(ks[4], (10, 20)),
        "fc2_b": jnp.full((10,), 0.01, jnp.float32),
    }


# ---------------------------------------------------------------------------
# Pure-JAX (XLA) reference of the PyTorch CNN2 forward (eval mode), HIGHEST
# precision so the cross-check isolates kernel indexing/layout errors.
# ---------------------------------------------------------------------------
def cnn2_reference(params, x):
    hi = jax.lax.Precision.HIGHEST

    def conv(a, w, b):
        y = jax.lax.conv_general_dilated(
            a, w, window_strides=(1, 1), padding="VALID",
            dimension_numbers=("NCHW", "OIHW", "NCHW"), precision=hi)
        return y + b.reshape(1, -1, 1, 1)

    def pool(a):
        return jax.lax.reduce_window(a, -jnp.inf, jax.lax.max,
                                     (1, 1, 2, 2), (1, 1, 2, 2), "VALID")

    y = _leaky(pool(conv(x, params["conv1_w"], params["conv1_b"])))
    y = _leaky(pool(conv(y, params["conv2_w"], params["conv2_b"])))
    y = _leaky(conv(y, params["conv3_w"], params["conv3_b"]))
    y = y.reshape(x.shape[0], -1)
    y = _leaky(jnp.dot(y, params["fc1_w"].T, precision=hi) + params["fc1_b"])
    return jnp.dot(y, params["fc2_w"].T, precision=hi) + params["fc2_b"]


if __name__ == "__main__":
    key = jax.random.PRNGKey(0)
    pkey, xkey = jax.random.split(key)
    channels_in = 3
    params = init_params(pkey, channels_in)
    # 28x28 spatial is required by the module's Linear(3*3*6, 20) flatten size.
    x = jax.random.normal(xkey, (2, channels_in, 28, 28), jnp.float32)

    packed = pack_params(params)                 # one-time weight repack (host)
    fwd = jax.jit(cnn2_forward)
    out = jax.block_until_ready(fwd(packed, x))
    assert out.shape == (2, 10), out.shape
    assert bool(jnp.all(jnp.isfinite(out)))

    # Tight numerical cross-check (all-float32 path; observed error ~1e-6).
    ref = jax.block_until_ready(jax.jit(cnn2_reference)(params, x))
    rel = float(jnp.max(jnp.abs(out - ref)) / (jnp.max(jnp.abs(ref)) + 1e-6))
    assert rel < 2e-5, f"kernel/reference mismatch: rel={rel}"

    print("KERNEL_OK")
</pallas_src>

<mosaic_0001>
module attributes {stable_mosaic.version = 11 : i64} {
  func.func @_cnn2_kernel(%arg0: i32, %arg1: memref<2x40x84xf32, #tpu.memory_space<vmem>>, %arg2: memref<5x84x144xf32, #tpu.memory_space<vmem>>, %arg3: memref<1x144xf32, #tpu.memory_space<vmem>>, %arg4: memref<5x143x72xf32, #tpu.memory_space<vmem>>, %arg5: memref<1x72xf32, #tpu.memory_space<vmem>>, %arg6: memref<4x71x54xf32, #tpu.memory_space<vmem>>, %arg7: memref<1x54xf32, #tpu.memory_space<vmem>>, %arg8: memref<54x20xf32, #tpu.memory_space<vmem>>, %arg9: memref<1x20xf32, #tpu.memory_space<vmem>>, %arg10: memref<20x10xf32, #tpu.memory_space<vmem>>, %arg11: memref<1x10xf32, #tpu.memory_space<vmem>>, %arg12: memref<2x10xf32, #tpu.memory_space<vmem>>) attributes {dimension_semantics = [#tpu.dimension_semantics<arbitrary>], iteration_bounds = array<i64: 1>, scalar_prefetch = 0 : i64, scratch_operands = 0 : i64, tpu.core_type = #tpu.core_type<tc>, window_params = [{pipeline_mode = #tpu.pipeline_mode<synchronous>, transform_indices = @transform_0, window_bounds = array<i64: 2, 40, 84>}, {pipeline_mode = #tpu.pipeline_mode<synchronous>, transform_indices = @transform_1, window_bounds = array<i64: 5, 84, 144>}, {pipeline_mode = #tpu.pipeline_mode<synchronous>, transform_indices = @transform_2, window_bounds = array<i64: 1, 144>}, {pipeline_mode = #tpu.pipeline_mode<synchronous>, transform_indices = @transform_3, window_bounds = array<i64: 5, 143, 72>}, {pipeline_mode = #tpu.pipeline_mode<synchronous>, transform_indices = @transform_4, window_bounds = array<i64: 1, 72>}, {pipeline_mode = #tpu.pipeline_mode<synchronous>, transform_indices = @transform_5, window_bounds = array<i64: 4, 71, 54>}, {pipeline_mode = #tpu.pipeline_mode<synchronous>, transform_indices = @transform_6, window_bounds = array<i64: 1, 54>}, {pipeline_mode = #tpu.pipeline_mode<synchronous>, transform_indices = @transform_7, window_bounds = array<i64: 54, 20>}, {pipeline_mode = #tpu.pipeline_mode<synchronous>, transform_indices = @transform_8, window_bounds = array<i64: 1, 20>}, {pipeline_mode = #tpu.pipeline_mode<synchronous>, transform_indices = @transform_9, window_bounds = array<i64: 20, 10>}, {pipeline_mode = #tpu.pipeline_mode<synchronous>, transform_indices = @transform_10, window_bounds = array<i64: 1, 10>}, {pipeline_mode = #tpu.pipeline_mode<synchronous>, transform_indices = @transform_11, window_bounds = array<i64: 2, 10>}]} {
    %cst = arith.constant 0.000000e+00 : f32
    %0 = vector.broadcast %cst : f32 to vector<64x144xf32>
    %c0 = arith.constant 0 : index
    %c0_0 = arith.constant 0 : index
    %c0_1 = arith.constant 0 : index
    %1 = vector.load %arg1[%c0, %c0_0, %c0_1] : memref<2x40x84xf32, #tpu.memory_space<vmem>>, vector<2x32x84xf32>
    %2 = vector.shape_cast %1 : vector<2x32x84xf32> to vector<64x84xf32>
    %c0_2 = arith.constant 0 : index
    %c0_3 = arith.constant 0 : index
    %c0_4 = arith.constant 0 : index
    %3 = vector.load %arg2[%c0_2, %c0_3, %c0_4] : memref<5x84x144xf32, #tpu.memory_space<vmem>>, vector<1x84x144xf32>
    %4 = vector.shape_cast %3 : vector<1x84x144xf32> to vector<84x144xf32>
    %cst_5 = arith.constant dense<0.000000e+00> : vector<64x144xf32>
    %5 = tpu.matmul %2, %4, %cst_5 {dimension_numbers = #tpu.dot_dimension_numbers<[1], [0], [0], [1], [0, 0, 1, 1], [], []>} : vector<64x84xf32>, vector<84x144xf32>, vector<64x144xf32> -> vector<64x144xf32>
    %6 = arith.addf %0, %5 : vector<64x144xf32>
    %c0_6 = arith.constant 0 : index
    %c1 = arith.constant 1 : index
    %c0_7 = arith.constant 0 : index
    %7 = vector.load %arg1[%c0_6, %c1, %c0_7] : memref<2x40x84xf32, #tpu.memory_space<vmem>>, vector<2x32x84xf32>
    %8 = vector.shape_cast %7 : vector<2x32x84xf32> to vector<64x84xf32>
    %c1_8 = arith.constant 1 : index
    %c0_9 = arith.constant 0 : index
    %c0_10 = arith.constant 0 : index
    %9 = vector.load %arg2[%c1_8, %c0_9, %c0_10] : memref<5x84x144xf32, #tpu.memory_space<vmem>>, vector<1x84x144xf32>
    %10 = vector.shape_cast %9 : vector<1x84x144xf32> to vector<84x144xf32>
    %cst_11 = arith.constant dense<0.000000e+00> : vector<64x144xf32>
    %11 = tpu.matmul %8, %10, %cst_11 {dimension_numbers = #tpu.dot_dimension_numbers<[1], [0], [0], [1], [0, 0, 1, 1], [], []>} : vector<64x84xf32>, vector<84x144xf32>, vector<64x144xf32> -> vector<64x144xf32>
    %12 = arith.addf %6, %11 : vector<64x144xf32>
    %c0_12 = arith.constant 0 : index
    %c2 = arith.constant 2 : index
    %c0_13 = arith.constant 0 : index
    %13 = vector.load %arg1[%c0_12, %c2, %c0_13] : memref<2x40x84xf32, #tpu.memory_space<vmem>>, vector<2x32x84xf32>
    %14 = vector.shape_cast %13 : vector<2x32x84xf32> to vector<64x84xf32>
    %c2_14 = arith.constant 2 : index
    %c0_15 = arith.constant 0 : index
    %c0_16 = arith.constant 0 : index
    %15 = vector.load %arg2[%c2_14, %c0_15, %c0_16] : memref<5x84x144xf32, #tpu.memory_space<vmem>>, vector<1x84x144xf32>
    %16 = vector.shape_cast %15 : vector<1x84x144xf32> to vector<84x144xf32>
    %cst_17 = arith.constant dense<0.000000e+00> : vector<64x144xf32>
    %17 = tpu.matmul %14, %16, %cst_17 {dimension_numbers = #tpu.dot_dimension_numbers<[1], [0], [0], [1], [0, 0, 1, 1], [], []>} : vector<64x84xf32>, vector<84x144xf32>, vector<64x144xf32> -> vector<64x144xf32>
    %18 = arith.addf %12, %17 : vector<64x144xf32>
    %c0_18 = arith.constant 0 : index
    %c3 = arith.constant 3 : index
    %c0_19 = arith.constant 0 : index
    %19 = vector.load %arg1[%c0_18, %c3, %c0_19] : memref<2x40x84xf32, #tpu.memory_space<vmem>>, vector<2x32x84xf32>
    %20 = vector.shape_cast %19 : vector<2x32x84xf32> to vector<64x84xf32>
    %c3_20 = arith.constant 3 : index
    %c0_21 = arith.constant 0 : index
    %c0_22 = arith.constant 0 : index
    %21 = vector.load %arg2[%c3_20, %c0_21, %c0_22] : memref<5x84x144xf32, #tpu.memory_space<vmem>>, vector<1x84x144xf32>
    %22 = vector.shape_cast %21 : vector<1x84x144xf32> to vector<84x144xf32>
    %cst_23 = arith.constant dense<0.000000e+00> : vector<64x144xf32>
    %23 = tpu.matmul %20, %22, %cst_23 {dimension_numbers = #tpu.dot_dimension_numbers<[1], [0], [0], [1], [0, 0, 1, 1], [], []>} : vector<64x84xf32>, vector<84x144xf32>, vector<64x144xf32> -> vector<64x144xf32>
    %24 = arith.addf %18, %23 : vector<64x144xf32>
    %c0_24 = arith.constant 0 : index
    %c4 = arith.constant 4 : index
    %c0_25 = arith.constant 0 : index
    %25 = vector.load %arg1[%c0_24, %c4, %c0_25] : memref<2x40x84xf32, #tpu.memory_space<vmem>>, vector<2x32x84xf32>
    %26 = vector.shape_cast %25 : vector<2x32x84xf32> to vector<64x84xf32>
    %c4_26 = arith.constant 4 : index
    %c0_27 = arith.constant 0 : index
    %c0_28 = arith.constant 0 : index
    %27 = vector.load %arg2[%c4_26, %c0_27, %c0_28] : memref<5x84x144xf32, #tpu.memory_space<vmem>>, vector<1x84x144xf32>
    %28 = vector.shape_cast %27 : vector<1x84x144xf32> to vector<84x144xf32>
    %cst_29 = arith.constant dense<0.000000e+00> : vector<64x144xf32>
    %29 = tpu.matmul %26, %28, %cst_29 {dimension_numbers = #tpu.dot_dimension_numbers<[1], [0], [0], [1], [0, 0, 1, 1], [], []>} : vector<64x84xf32>, vector<84x144xf32>, vector<64x144xf32> -> vector<64x144xf32>
    %30 = arith.addf %24, %29 : vector<64x144xf32>
    %c0_30 = arith.constant 0 : index
    %c0_31 = arith.constant 0 : index
    %31 = vector.load %arg3[%c0_30, %c0_31] : memref<1x144xf32, #tpu.memory_space<vmem>>, vector<1x144xf32>
    %32 = vector.broadcast %31 : vector<1x144xf32> to vector<64x144xf32>
    %33 = arith.addf %30, %32 : vector<64x144xf32>
    %34 = vector.shape_cast %33 : vector<64x144xf32> to vector<2x32x144xf32>
    %35 = vector.extract_strided_slice %34 {offsets = [0, 0, 0], sizes = [2, 24, 144], strides = [1, 1, 1]} : vector<2x32x144xf32> to vector<2x24x144xf32>
    %36 = vector.extract_strided_slice %34 {offsets = [0, 1, 0], sizes = [2, 24, 144], strides = [1, 1, 1]} : vector<2x32x144xf32> to vector<2x24x144xf32>
    %37 = arith.maximumf %35, %36 : vector<2x24x144xf32>
    %38 = vector.extract_strided_slice %37 {offsets = [0, 0, 0], sizes = [2, 24, 143], strides = [1, 1, 1]} : vector<2x24x144xf32> to vector<2x24x143xf32>
    %39 = vector.extract_strided_slice %37 {offsets = [0, 0, 1], sizes = [2, 24, 143], strides = [1, 1, 1]} : vector<2x24x144xf32> to vector<2x24x143xf32>
    %40 = arith.maximumf %38, %39 : vector<2x24x143xf32>
    %cst_32 = arith.constant 0.000000e+00 : f32
    %41 = vector.broadcast %cst_32 : f32 to vector<2x24x143xf32>
    %42 = arith.cmpf oge, %40, %41 : vector<2x24x143xf32>
    %cst_33 = arith.constant 0.00999999977 : f32
    %43 = vector.broadcast %cst_33 : f32 to vector<2x24x143xf32>
    %44 = arith.mulf %43, %40 : vector<2x24x143xf32>
    %45 = arith.select %42, %40, %44 : vector<2x24x143xi1>, vector<2x24x143xf32>
    %cst_34 = arith.constant 0.000000e+00 : f32
    %46 = vector.broadcast %cst_34 : f32 to vector<32x72xf32>
    %47 = vector.extract_strided_slice %45 {offsets = [0, 0, 0], sizes = [2, 16, 143], strides = [1, 1, 1]} : vector<2x24x143xf32> to vector<2x16x143xf32>
    %48 = vector.shape_cast %47 : vector<2x16x143xf32> to vector<32x143xf32>
    %c0_35 = arith.constant 0 : index
    %c0_36 = arith.constant 0 : index
    %c0_37 = arith.constant 0 : index
    %49 = vector.load %arg4[%c0_35, %c0_36, %c0_37] : memref<5x143x72xf32, #tpu.memory_space<vmem>>, vector<1x143x72xf32>
    %50 = vector.shape_cast %49 : vector<1x143x72xf32> to vector<143x72xf32>
    %cst_38 = arith.constant dense<0.000000e+00> : vector<32x72xf32>
    %51 = tpu.matmul %48, %50, %cst_38 {dimension_numbers = #tpu.dot_dimension_numbers<[1], [0], [0], [1], [0, 0, 1, 1], [], []>} : vector<32x143xf32>, vector<143x72xf32>, vector<32x72xf32> -> vector<32x72xf32>
    %52 = arith.addf %46, %51 : vector<32x72xf32>
    %53 = vector.extract_strided_slice %45 {offsets = [0, 2, 0], sizes = [2, 16, 143], strides = [1, 1, 1]} : vector<2x24x143xf32> to vector<2x16x143xf32>
    %54 = vector.shape_cast %53 : vector<2x16x143xf32> to vector<32x143xf32>
    %c1_39 = arith.constant 1 : index
    %c0_40 = arith.constant 0 : index
    %c0_41 = arith.constant 0 : index
    %55 = vector.load %arg4[%c1_39, %c0_40, %c0_41] : memref<5x143x72xf32, #tpu.memory_space<vmem>>, vector<1x143x72xf32>
    %56 = vector.shape_cast %55 : vector<1x143x72xf32> to vector<143x72xf32>
    %cst_42 = arith.constant dense<0.000000e+00> : vector<32x72xf32>
    %57 = tpu.matmul %54, %56, %cst_42 {dimension_numbers = #tpu.dot_dimension_numbers<[1], [0], [0], [1], [0, 0, 1, 1], [], []>} : vector<32x143xf32>, vector<143x72xf32>, vector<32x72xf32> -> vector<32x72xf32>
    %58 = arith.addf %52, %57 : vector<32x72xf32>
    %59 = vector.extract_strided_slice %45 {offsets = [0, 4, 0], sizes = [2, 16, 143], strides = [1, 1, 1]} : vector<2x24x143xf32> to vector<2x16x143xf32>
    %60 = vector.shape_cast %59 : vector<2x16x143xf32> to vector<32x143xf32>
    %c2_43 = arith.constant 2 : index
    %c0_44 = arith.constant 0 : index
    %c0_45 = arith.constant 0 : index
    %61 = vector.load %arg4[%c2_43, %c0_44, %c0_45] : memref<5x143x72xf32, #tpu.memory_space<vmem>>, vector<1x143x72xf32>
    %62 = vector.shape_cast %61 : vector<1x143x72xf32> to vector<143x72xf32>
    %cst_46 = arith.constant dense<0.000000e+00> : vector<32x72xf32>
    %63 = tpu.matmul %60, %62, %cst_46 {dimension_numbers = #tpu.dot_dimension_numbers<[1], [0], [0], [1], [0, 0, 1, 1], [], []>} : vector<32x143xf32>, vector<143x72xf32>, vector<32x72xf32> -> vector<32x72xf32>
    %64 = arith.addf %58, %63 : vector<32x72xf32>
    %65 = vector.extract_strided_slice %45 {offsets = [0, 6, 0], sizes = [2, 16, 143], strides = [1, 1, 1]} : vector<2x24x143xf32> to vector<2x16x143xf32>
    %66 = vector.shape_cast %65 : vector<2x16x143xf32> to vector<32x143xf32>
    %c3_47 = arith.constant 3 : index
    %c0_48 = arith.constant 0 : index
    %c0_49 = arith.constant 0 : index
    %67 = vector.load %arg4[%c3_47, %c0_48, %c0_49] : memref<5x143x72xf32, #tpu.memory_space<vmem>>, vector<1x143x72xf32>
    %68 = vector.shape_cast %67 : vector<1x143x72xf32> to vector<143x72xf32>
    %cst_50 = arith.constant dense<0.000000e+00> : vector<32x72xf32>
    %69 = tpu.matmul %66, %68, %cst_50 {dimension_numbers = #tpu.dot_dimension_numbers<[1], [0], [0], [1], [0, 0, 1, 1], [], []>} : vector<32x143xf32>, vector<143x72xf32>, vector<32x72xf32> -> vector<32x72xf32>
    %70 = arith.addf %64, %69 : vector<32x72xf32>
    %71 = vector.extract_strided_slice %45 {offsets = [0, 8, 0], sizes = [2, 16, 143], strides = [1, 1, 1]} : vector<2x24x143xf32> to vector<2x16x143xf32>
    %72 = vector.shape_cast %71 : vector<2x16x143xf32> to vector<32x143xf32>
    %c4_51 = arith.constant 4 : index
    %c0_52 = arith.constant 0 : index
    %c0_53 = arith.constant 0 : index
    %73 = vector.load %arg4[%c4_51, %c0_52, %c0_53] : memref<5x143x72xf32, #tpu.memory_space<vmem>>, vector<1x143x72xf32>
    %74 = vector.shape_cast %73 : vector<1x143x72xf32> to vector<143x72xf32>
    %cst_54 = arith.constant dense<0.000000e+00> : vector<32x72xf32>
    %75 = tpu.matmul %72, %74, %cst_54 {dimension_numbers = #tpu.dot_dimension_numbers<[1], [0], [0], [1], [0, 0, 1, 1], [], []>} : vector<32x143xf32>, vector<143x72xf32>, vector<32x72xf32> -> vector<32x72xf32>
    %76 = arith.addf %70, %75 : vector<32x72xf32>
    %c0_55 = arith.constant 0 : index
    %c0_56 = arith.constant 0 : index
    %77 = vector.load %arg5[%c0_55, %c0_56] : memref<1x72xf32, #tpu.memory_space<vmem>>, vector<1x72xf32>
    %78 = vector.broadcast %77 : vector<1x72xf32> to vector<32x72xf32>
    %79 = arith.addf %76, %78 : vector<32x72xf32>
    %80 = vector.shape_cast %79 : vector<32x72xf32> to vector<2x16x72xf32>
    %81 = vector.extract_strided_slice %80 {offsets = [0, 0, 0], sizes = [2, 14, 72], strides = [1, 1, 1]} : vector<2x16x72xf32> to vector<2x14x72xf32>
    %82 = vector.extract_strided_slice %80 {offsets = [0, 2, 0], sizes = [2, 14, 72], strides = [1, 1, 1]} : vector<2x16x72xf32> to vector<2x14x72xf32>
    %83 = arith.maximumf %81, %82 : vector<2x14x72xf32>
    %84 = vector.extract_strided_slice %83 {offsets = [0, 0, 0], sizes = [2, 14, 71], strides = [1, 1, 1]} : vector<2x14x72xf32> to vector<2x14x71xf32>
    %85 = vector.extract_strided_slice %83 {offsets = [0, 0, 1], sizes = [2, 14, 71], strides = [1, 1, 1]} : vector<2x14x72xf32> to vector<2x14x71xf32>
    %86 = arith.maximumf %84, %85 : vector<2x14x71xf32>
    %cst_57 = arith.constant 0.000000e+00 : f32
    %87 = vector.broadcast %cst_57 : f32 to vector<2x14x71xf32>
    %88 = arith.cmpf oge, %86, %87 : vector<2x14x71xf32>
    %cst_58 = arith.constant 0.00999999977 : f32
    %89 = vector.broadcast %cst_58 : f32 to vector<2x14x71xf32>
    %90 = arith.mulf %89, %86 : vector<2x14x71xf32>
    %91 = arith.select %88, %86, %90 : vector<2x14x71xi1>, vector<2x14x71xf32>
    %cst_59 = arith.constant 0.000000e+00 : f32
    %92 = vector.broadcast %cst_59 : f32 to vector<2x54xf32>
    %93 = vector.extract_strided_slice %91 {offsets = [0, 0, 0], sizes = [2, 1, 71], strides = [1, 1, 1]} : vector<2x14x71xf32> to vector<2x1x71xf32>
    %94 = vector.shape_cast %93 : vector<2x1x71xf32> to vector<2x71xf32>
    %c0_60 = arith.constant 0 : index
    %c0_61 = arith.constant 0 : index
    %c0_62 = arith.constant 0 : index
    %95 = vector.load %arg6[%c0_60, %c0_61, %c0_62] : memref<4x71x54xf32, #tpu.memory_space<vmem>>, vector<1x71x54xf32>
    %96 = vector.shape_cast %95 : vector<1x71x54xf32> to vector<71x54xf32>
    %cst_63 = arith.constant dense<0.000000e+00> : vector<2x54xf32>
    %97 = tpu.matmul %94, %96, %cst_63 {dimension_numbers = #tpu.dot_dimension_numbers<[1], [0], [0], [1], [0, 0, 1, 1], [], []>} : vector<2x71xf32>, vector<71x54xf32>, vector<2x54xf32> -> vector<2x54xf32>
    %98 = arith.addf %92, %97 : vector<2x54xf32>
    %99 = vector.extract_strided_slice %91 {offsets = [0, 4, 0], sizes = [2, 1, 71], strides = [1, 1, 1]} : vector<2x14x71xf32> to vector<2x1x71xf32>
    %100 = vector.shape_cast %99 : vector<2x1x71xf32> to vector<2x71xf32>
    %c1_64 = arith.constant 1 : index
    %c0_65 = arith.constant 0 : index
    %c0_66 = arith.constant 0 : index
    %101 = vector.load %arg6[%c1_64, %c0_65, %c0_66] : memref<4x71x54xf32, #tpu.memory_space<vmem>>, vector<1x71x54xf32>
    %102 = vector.shape_cast %101 : vector<1x71x54xf32> to vector<71x54xf32>
    %cst_67 = arith.constant dense<0.000000e+00> : vector<2x54xf32>
    %103 = tpu.matmul %100, %102, %cst_67 {dimension_numbers = #tpu.dot_dimension_numbers<[1], [0], [0], [1], [0, 0, 1, 1], [], []>} : vector<2x71xf32>, vector<71x54xf32>, vector<2x54xf32> -> vector<2x54xf32>
    %104 = arith.addf %98, %103 : vector<2x54xf32>
    %105 = vector.extract_strided_slice %91 {offsets = [0, 8, 0], sizes = [2, 1, 71], strides = [1, 1, 1]} : vector<2x14x71xf32> to vector<2x1x71xf32>
    %106 = vector.shape_cast %105 : vector<2x1x71xf32> to vector<2x71xf32>
    %c2_68 = arith.constant 2 : index
    %c0_69 = arith.constant 0 : index
    %c0_70 = arith.constant 0 : index
    %107 = vector.load %arg6[%c2_68, %c0_69, %c0_70] : memref<4x71x54xf32, #tpu.memory_space<vmem>>, vector<1x71x54xf32>
    %108 = vector.shape_cast %107 : vector<1x71x54xf32> to vector<71x54xf32>
    %cst_71 = arith.constant dense<0.000000e+00> : vector<2x54xf32>
    %109 = tpu.matmul %106, %108, %cst_71 {dimension_numbers = #tpu.dot_dimension_numbers<[1], [0], [0], [1], [0, 0, 1, 1], [], []>} : vector<2x71xf32>, vector<71x54xf32>, vector<2x54xf32> -> vector<2x54xf32>
    %110 = arith.addf %104, %109 : vector<2x54xf32>
    %111 = vector.extract_strided_slice %91 {offsets = [0, 12, 0], sizes = [2, 1, 71], strides = [1, 1, 1]} : vector<2x14x71xf32> to vector<2x1x71xf32>
    %112 = vector.shape_cast %111 : vector<2x1x71xf32> to vector<2x71xf32>
    %c3_72 = arith.constant 3 : index
    %c0_73 = arith.constant 0 : index
    %c0_74 = arith.constant 0 : index
    %113 = vector.load %arg6[%c3_72, %c0_73, %c0_74] : memref<4x71x54xf32, #tpu.memory_space<vmem>>, vector<1x71x54xf32>
    %114 = vector.shape_cast %113 : vector<1x71x54xf32> to vector<71x54xf32>
    %cst_75 = arith.constant dense<0.000000e+00> : vector<2x54xf32>
    %115 = tpu.matmul %112, %114, %cst_75 {dimension_numbers = #tpu.dot_dimension_numbers<[1], [0], [0], [1], [0, 0, 1, 1], [], []>} : vector<2x71xf32>, vector<71x54xf32>, vector<2x54xf32> -> vector<2x54xf32>
    %116 = arith.addf %110, %115 : vector<2x54xf32>
    %c0_76 = arith.constant 0 : index
    %c0_77 = arith.constant 0 : index
    %117 = vector.load %arg7[%c0_76, %c0_77] : memref<1x54xf32, #tpu.memory_space<vmem>>, vector<1x54xf32>
    %118 = vector.broadcast %117 : vector<1x54xf32> to vector<2x54xf32>
    %119 = arith.addf %116, %118 : vector<2x54xf32>
    %cst_78 = arith.constant 0.000000e+00 : f32
    %120 = vector.broadcast %cst_78 : f32 to vector<2x54xf32>
    %121 = arith.cmpf oge, %119, %120 : vector<2x54xf32>
    %cst_79 = arith.constant 0.00999999977 : f32
    %122 = vector.broadcast %cst_79 : f32 to vector<2x54xf32>
    %123 = arith.mulf %122, %119 : vector<2x54xf32>
    %124 = arith.select %121, %119, %123 : vector<2x54xi1>, vector<2x54xf32>
    %c0_80 = arith.constant 0 : index
    %c0_81 = arith.constant 0 : index
    %125 = vector.load %arg8[%c0_80, %c0_81] : memref<54x20xf32, #tpu.memory_space<vmem>>, vector<54x20xf32>
    %cst_82 = arith.constant dense<0.000000e+00> : vector<2x20xf32>
    %126 = tpu.matmul %124, %125, %cst_82 {dimension_numbers = #tpu.dot_dimension_numbers<[1], [0], [0], [1], [0, 0, 1, 1], [], []>} : vector<2x54xf32>, vector<54x20xf32>, vector<2x20xf32> -> vector<2x20xf32>
    %c0_83 = arith.constant 0 : index
    %c0_84 = arith.constant 0 : index
    %127 = vector.load %arg9[%c0_83, %c0_84] : memref<1x20xf32, #tpu.memory_space<vmem>>, vector<1x20xf32>
    %128 = vector.broadcast %127 : vector<1x20xf32> to vector<2x20xf32>
    %129 = arith.addf %126, %128 : vector<2x20xf32>
    %cst_85 = arith.constant 0.000000e+00 : f32
    %130 = vector.broadcast %cst_85 : f32 to vector<2x20xf32>
    %131 = arith.cmpf oge, %129, %130 : vector<2x20xf32>
    %cst_86 = arith.constant 0.00999999977 : f32
    %132 = vector.broadcast %cst_86 : f32 to vector<2x20xf32>
    %133 = arith.mulf %132, %129 : vector<2x20xf32>
    %134 = arith.select %131, %129, %133 : vector<2x20xi1>, vector<2x20xf32>
    %c0_87 = arith.constant 0 : index
    %c0_88 = arith.constant 0 : index
    %135 = vector.load %arg10[%c0_87, %c0_88] : memref<20x10xf32, #tpu.memory_space<vmem>>, vector<20x10xf32>
    %cst_89 = arith.constant dense<0.000000e+00> : vector<2x10xf32>
    %136 = tpu.matmul %134, %135, %cst_89 {dimension_numbers = #tpu.dot_dimension_numbers<[1], [0], [0], [1], [0, 0, 1, 1], [], []>} : vector<2x20xf32>, vector<20x10xf32>, vector<2x10xf32> -> vector<2x10xf32>
    %c0_90 = arith.constant 0 : index
    %c0_91 = arith.constant 0 : index
    %137 = vector.load %arg11[%c0_90, %c0_91] : memref<1x10xf32, #tpu.memory_space<vmem>>, vector<1x10xf32>
    %138 = vector.broadcast %137 : vector<1x10xf32> to vector<2x10xf32>
    %139 = arith.addf %136, %138 : vector<2x10xf32>
    %c0_92 = arith.constant 0 : index
    %c0_93 = arith.constant 0 : index
    %140 = vector.load %arg12[%c0_92, %c0_93] : memref<2x10xf32, #tpu.memory_space<vmem>>, vector<2x10xf32>
    tpu.vector_store %arg12[%c0_92, %c0_93], %139 {strides = array<i32>} : memref<2x10xf32, #tpu.memory_space<vmem>>, vector<2x10xf32>,
    return
  }
  func.func @transform_0(%arg0: i32) -> (i32, i32, i32) {
    %c0_i32 = arith.constant 0 : i32
    %c0_i32_0 = arith.constant 0 : i32
    %c0_i32_1 = arith.constant 0 : i32
    %c0_i32_2 = arith.constant 0 : i32
    return %c0_i32, %c0_i32_0, %c0_i32_1 : i32, i32, i32
  }
  func.func @transform_1(%arg0: i32) -> (i32, i32, i32) {
    %c0_i32 = arith.constant 0 : i32
    %c0_i32_0 = arith.constant 0 : i32
    %c0_i32_1 = arith.constant 0 : i32
    %c0_i32_2 = arith.constant 0 : i32
    return %c0_i32, %c0_i32_0, %c0_i32_1 : i32, i32, i32
  }
  func.func @transform_2(%arg0: i32) -> (i32, i32) {
    %c0_i32 = arith.constant 0 : i32
    %c0_i32_0 = arith.constant 0 : i32
    %c0_i32_1 = arith.constant 0 : i32
    return %c0_i32, %c0_i32_0 : i32, i32
  }
  func.func @transform_3(%arg0: i32) -> (i32, i32, i32) {
    %c0_i32 = arith.constant 0 : i32
    %c0_i32_0 = arith.constant 0 : i32
    %c0_i32_1 = arith.constant 0 : i32
    %c0_i32_2 = arith.constant 0 : i32
    return %c0_i32, %c0_i32_0, %c0_i32_1 : i32, i32, i32
  }
  func.func @transform_4(%arg0: i32) -> (i32, i32) {
    %c0_i32 = arith.constant 0 : i32
    %c0_i32_0 = arith.constant 0 : i32
    %c0_i32_1 = arith.constant 0 : i32
    return %c0_i32, %c0_i32_0 : i32, i32
  }
  func.func @transform_5(%arg0: i32) -> (i32, i32, i32) {
    %c0_i32 = arith.constant 0 : i32
    %c0_i32_0 = arith.constant 0 : i32
    %c0_i32_1 = arith.constant 0 : i32
    %c0_i32_2 = arith.constant 0 : i32
    return %c0_i32, %c0_i32_0, %c0_i32_1 : i32, i32, i32
  }
  func.func @transform_6(%arg0: i32) -> (i32, i32) {
    %c0_i32 = arith.constant 0 : i32
    %c0_i32_0 = arith.constant 0 : i32
    %c0_i32_1 = arith.constant 0 : i32
    return %c0_i32, %c0_i32_0 : i32, i32
  }
  func.func @transform_7(%arg0: i32) -> (i32, i32) {
    %c0_i32 = arith.constant 0 : i32
    %c0_i32_0 = arith.constant 0 : i32
    %c0_i32_1 = arith.constant 0 : i32
    return %c0_i32, %c0_i32_0 : i32, i32
  }
  func.func @transform_8(%arg0: i32) -> (i32, i32) {
    %c0_i32 = arith.constant 0 : i32
    %c0_i32_0 = arith.constant 0 : i32
    %c0_i32_1 = arith.constant 0 : i32
    return %c0_i32, %c0_i32_0 : i32, i32
  }
  func.func @transform_9(%arg0: i32) -> (i32, i32) {
    %c0_i32 = arith.constant 0 : i32
    %c0_i32_0 = arith.constant 0 : i32
    %c0_i32_1 = arith.constant 0 : i32
    return %c0_i32, %c0_i32_0 : i32, i32
  }
  func.func @transform_10(%arg0: i32) -> (i32, i32) {
    %c0_i32 = arith.constant 0 : i32
    %c0_i32_0 = arith.constant 0 : i32
    %c0_i32_1 = arith.constant 0 : i32
    return %c0_i32, %c0_i32_0 : i32, i32
  }
  func.func @transform_11(%arg0: i32) -> (i32, i32) {
    %c0_i32 = arith.constant 0 : i32
    %c0_i32_0 = arith.constant 0 : i32
    %c0_i32_1 = arith.constant 0 : i32
    return %c0_i32, %c0_i32_0 : i32, i32
  }
}

</mosaic_0001>

<llo_original>
// kernel: cnn2_forward.1
$region0: #{cnn2_forward.1}
  #allocation0 [shape = 'u32[]', space=smem, size = 0x4, offset = 0x4, fixed_abs, tag = 'smem constant byte address 0x4 - core index']
  #allocation1 [shape = 'u32[144,128]{1,0:T(1,128)}', space=vmem, size = 0x12000, scoped, tag = 'internal scratch']
  %s0 = inlined_call_operand.vmem [shape: f32[2,40,84], index: 0, kind: input, shape index: {}]
  %s1 = inlined_call_operand.vmem [shape: f32[5,84,144], index: 1, kind: input, shape index: {}]
  %s2 = inlined_call_operand.vmem [shape: f32[1,144], index: 2, kind: input, shape index: {}]
  %s3 = inlined_call_operand.vmem [shape: f32[5,143,72], index: 3, kind: input, shape index: {}]
  %s4 = inlined_call_operand.vmem [shape: f32[1,72], index: 4, kind: input, shape index: {}]
  %s5 = inlined_call_operand.vmem [shape: f32[4,71,54], index: 5, kind: input, shape index: {}]
  %s6 = inlined_call_operand.vmem [shape: f32[1,54], index: 6, kind: input, shape index: {}]
  %s7 = inlined_call_operand.vmem [shape: f32[54,20], index: 7, kind: input, shape index: {}]
  %s8 = inlined_call_operand.vmem [shape: f32[1,20], index: 8, kind: input, shape index: {}]
  %s9 = inlined_call_operand.vmem [shape: f32[20,10], index: 9, kind: input, shape index: {}]
  %s10 = inlined_call_operand.vmem [shape: f32[1,10], index: 10, kind: input, shape index: {}]
  %s11 = inlined_call_operand.hbm [shape: f32[2,10], index: 11, kind: output, shape index: {}]
  %s12 = sld [smem:[#allocation0]]
  $region54: #{cnn2_forward.1} parent=0
    _
  %s14 = ssub.s32 1, %s12
  %s15 = scalar_select 0, %s14, %s12
  $region1: #{cnn2_forward.1} parent=0
    #allocation2 [shape = 'u8[1024]{0}', space=vmem, size = 0x400, scoped, tag = 'output window, operand 0, single buffered']
    #allocation3 [shape = 's32[1]{0}', space=sflag, size = 0x4, scoped, tag = 'scoped memory for cnn2_forward.1']
    %16 = vsyncpa [#allocation3], 0
    // Predicated region
    $region2: #{cnn2_forward.1} parent=1 // pred_check
      _
    $region3: #{cnn2_forward.1} parent=1 // pred_check_branch
      %18 = sbr.rel (0) target = $region5
    $region4: #{cnn2_forward.1} parent=1 // pred_region
      _
    $region5: #{cnn2_forward.1} parent=1 // pred_fallthru
      _
    // Predicated region
    $region6: #{cnn2_forward.1} parent=1 // pred_check
      _
    $region7: #{cnn2_forward.1} parent=1 // pred_check_branch
      %20 = sbr.rel (0) target = $region9
    $region8: #{cnn2_forward.1} parent=1 // pred_region
      _
    $region9: #{cnn2_forward.1} parent=1 // pred_fallthru
      _
    // Predicated region
    $region10: #{cnn2_forward.1} parent=1 // pred_check
      _
    $region11: #{cnn2_forward.1} parent=1 // pred_check_branch
      %22 = sbr.rel (0) target = $region13
    $region12: #{cnn2_forward.1} parent=1 // pred_region
      _
    $region13: #{cnn2_forward.1} parent=1 // pred_fallthru
      _
    // Predicated region
    $region14: #{cnn2_forward.1} parent=1 // pred_check
      _
    $region15: #{cnn2_forward.1} parent=1 // pred_check_branch
      %24 = sbr.rel (0) target = $region17
    $region16: #{cnn2_forward.1} parent=1 // pred_region
      _
    $region17: #{cnn2_forward.1} parent=1 // pred_fallthru
      _
    // Predicated region
    $region18: #{cnn2_forward.1} parent=1 // pred_check
      _
    $region19: #{cnn2_forward.1} parent=1 // pred_check_branch
      %26 = sbr.rel (0) target = $region21
    $region20: #{cnn2_forward.1} parent=1 // pred_region
      _
    $region21: #{cnn2_forward.1} parent=1 // pred_fallthru
      _
    // Predicated region
    $region22: #{cnn2_forward.1} parent=1 // pred_check
      _
    $region23: #{cnn2_forward.1} parent=1 // pred_check_branch
      %28 = sbr.rel (0) target = $region25
    $region24: #{cnn2_forward.1} parent=1 // pred_region
      _
    $region25: #{cnn2_forward.1} parent=1 // pred_fallthru
      _
    // Predicated region
    $region26: #{cnn2_forward.1} parent=1 // pred_check
      _
    $region27: #{cnn2_forward.1} parent=1 // pred_check_branch
      %30 = sbr.rel (0) target = $region29
    $region28: #{cnn2_forward.1} parent=1 // pred_region
      _
    $region29: #{cnn2_forward.1} parent=1 // pred_fallthru
      _
    // Predicated region
    $region30: #{cnn2_forward.1} parent=1 // pred_check
      _
    $region31: #{cnn2_forward.1} parent=1 // pred_check_branch
      %32 = sbr.rel (0) target = $region33
    $region32: #{cnn2_forward.1} parent=1 // pred_region
      _
    $region33: #{cnn2_forward.1} parent=1 // pred_fallthru
      _
    // Predicated region
    $region34: #{cnn2_forward.1} parent=1 // pred_check
      _
    $region35: #{cnn2_forward.1} parent=1 // pred_check_branch
      %34 = sbr.rel (0) target = $region37
    $region36: #{cnn2_forward.1} parent=1 // pred_region
      _
    $region37: #{cnn2_forward.1} parent=1 // pred_fallthru
      _
    // Predicated region
    $region38: #{cnn2_forward.1} parent=1 // pred_check
      _
    $region39: #{cnn2_forward.1} parent=1 // pred_check_branch
      %36 = sbr.rel (0) target = $region41
    $region40: #{cnn2_forward.1} parent=1 // pred_region
      _
    $region41: #{cnn2_forward.1} parent=1 // pred_fallthru
      _
    // Predicated region
    $region42: #{cnn2_forward.1} parent=1 // pred_check
      _
    $region43: #{cnn2_forward.1} parent=1 // pred_check_branch
      %38 = sbr.rel (0) target = $region45
    $region44: #{cnn2_forward.1} parent=1 // pred_region
      _
    $region45: #{cnn2_forward.1} parent=1 // pred_fallthru
      _
    %v39 = vld [vmem:[%s0] sm:$0xff]
    %v40 = vld [vmem:[%s0 + $0x8] sm:$0xff]
    %v41 = vld [vmem:[%s0 + $0x10] sm:$0xff]
    %v42 = vld [vmem:[%s0 + $0x18] sm:$0xff]
    %v43 = vld [vmem:[%s0 + $0x28] sm:$0xff]
    %v44 = vld [vmem:[%s0 + $0x30] sm:$0xff]
    %v45 = vld [vmem:[%s0 + $0x38] sm:$0xff]
    %v46 = vld [vmem:[%s0 + $0x40] sm:$0xff]
    %v47 = vld [vmem:[%s1] sm:$0xff]
    %v48 = vld [vmem:[%s1 + $0x8] sm:$0xff]
    %v49 = vld [vmem:[%s1 + $0x10] sm:$0xff]
    %v50 = vld [vmem:[%s1 + $0x18] sm:$0xff]
    %v51 = vld [vmem:[%s1 + $0x20] sm:$0xff]
    %v52 = vld [vmem:[%s1 + $0x28] sm:$0xff]
    %v53 = vld [vmem:[%s1 + $0x30] sm:$0xff]
    %v54 = vld [vmem:[%s1 + $0x38] sm:$0xff]
    %v55 = vld [vmem:[%s1 + $0x40] sm:$0xff]
    %v56 = vld [vmem:[%s1 + $0x48] sm:$0xff]
    %v57 = vld [vmem:[%s1 + $0x50] sm:$0xff]
    %v58 = vld [vmem:[%s1 + $0x58] sm:$0xff]
    %v59 = vld [vmem:[%s1 + $0x60] sm:$0xff]
    %v60 = vld [vmem:[%s1 + $0x68] sm:$0xff]
    %v61 = vld [vmem:[%s1 + $0x70] sm:$0xff]
    %v62 = vld [vmem:[%s1 + $0x78] sm:$0xff]
    %v63 = vld [vmem:[%s1 + $0x80] sm:$0xff]
    %v64 = vld [vmem:[%s1 + $0x88] sm:$0xff]
    %v65 = vld [vmem:[%s1 + $0x90] sm:$0xff]
    %v66 = vld [vmem:[%s1 + $0x98] sm:$0xff]
    %v67 = vld [vmem:[%s1 + $0xa0] sm:$0xf]
    %v68 = vld [vmem:[%s1 + $0xa8] sm:$0xf]
    %v69 = vld [vmem:[%s0 + $0x1] sm:$0xff]
    %v70 = vld [vmem:[%s0 + $0x9] sm:$0xff]
    %v71 = vld [vmem:[%s0 + $0x11] sm:$0xff]
    %v72 = vld [vmem:[%s0 + $0x19] sm:$0xff]
    %v73 = vld [vmem:[%s0 + $0x29] sm:$0xff]
    %v74 = vld [vmem:[%s0 + $0x31] sm:$0xff]
    %v75 = vld [vmem:[%s0 + $0x39] sm:$0xff]
    %v76 = vld [vmem:[%s0 + $0x41] sm:$0xff]
    %s77 = scalar_lea.vmem %s1, 176
    %v78 = vld [vmem:[%s77] sm:$0xff]
    %v79 = vld [vmem:[%s77 + $0x8] sm:$0xff]
    %v80 = vld [vmem:[%s77 + $0x10] sm:$0xff]
    %v81 = vld [vmem:[%s77 + $0x18] sm:$0xff]
    %v82 = vld [vmem:[%s77 + $0x20] sm:$0xff]
    %v83 = vld [vmem:[%s77 + $0x28] sm:$0xff]
    %v84 = vld [vmem:[%s77 + $0x30] sm:$0xff]
    %v85 = vld [vmem:[%s77 + $0x38] sm:$0xff]
    %v86 = vld [vmem:[%s77 + $0x40] sm:$0xff]
    %v87 = vld [vmem:[%s77 + $0x48] sm:$0xff]
    %v88 = vld [vmem:[%s77 + $0x50] sm:$0xff]
    %v89 = vld [vmem:[%s77 + $0x58] sm:$0xff]
    %v90 = vld [vmem:[%s77 + $0x60] sm:$0xff]
    %v91 = vld [vmem:[%s77 + $0x68] sm:$0xff]
    %v92 = vld [vmem:[%s77 + $0x70] sm:$0xff]
    %v93 = vld [vmem:[%s77 + $0x78] sm:$0xff]
    %v94 = vld [vmem:[%s77 + $0x80] sm:$0xff]
    %v95 = vld [vmem:[%s77 + $0x88] sm:$0xff]
    %v96 = vld [vmem:[%s77 + $0x90] sm:$0xff]
    %v97 = vld [vmem:[%s77 + $0x98] sm:$0xff]
    %v98 = vld [vmem:[%s77 + $0xa0] sm:$0xf]
    %v99 = vld [vmem:[%s77 + $0xa8] sm:$0xf]
    %vm100 = vcmask 687104
    %v102 = vsel %vm100, %v69, 0
    %v105 = vsel %vm100, %v70, 0
    %v108 = vsel %vm100, %v71, 0
    %v111 = vsel %vm100, %v72, 0
    %v114 = vsel %vm100, %v73, 0
    %v117 = vsel %vm100, %v74, 0
    %v120 = vsel %vm100, %v75, 0
    %v123 = vsel %vm100, %v76, 0
    %vm125 = vcmask 1043456
    %v127 = vsel %vm125, %v98, 0
    %v130 = vsel %vm125, %v99, 0
    %132 = vmatprep.subr.mxu0 0.0
    %133 = vmatpush1.msra.mxu0 0.0
    %134 = vmatprep.subr.mxu0 0.0
    %135 = vmatpush1.msra.mxu0 0.0
    %136 = vmatprep.subr.mxu0 0.0
    %137 = vmatpush1.msra.mxu0 0.0
    %138 = vmatprep.subr.mxu0 0.0
    %139 = vmatpush1.msra.mxu0 0.0
    %140 = vmatprep.subr.mxu0 0.0
    %141 = vmatpush1.msra.mxu0 0.0
    %142 = vmatprep.subr.mxu0 %v130
    %143 = vmatpush1.msra.mxu0 %v127
    %144 = vmatprep.subr.mxu0 %v97
    %145 = vmatpush1.msra.mxu0 %v96
    %146 = vmatprep.subr.mxu0 %v95
    %147 = vmatpush1.msra.mxu0 %v94
    %148 = vmatprep.subr.mxu0 %v93
    %149 = vmatpush1.msra.mxu0 %v92
    %150 = vmatprep.subr.mxu0 %v91
    %151 = vmatpush1.msra.mxu0 %v90
    %152 = vmatprep.subr.mxu0 %v89
    %153 = vmatpush1.msra.mxu0 %v88
    %154 = vmatprep.subr.mxu0 %v87
    %155 = vmatpush1.msra.mxu0 %v86
    %156 = vmatprep.subr.mxu0 %v85
    %157 = vmatpush1.msra.mxu0 %v84
    %158 = vmatprep.subr.mxu0 %v83
    %159 = vmatpush1.msra.mxu0 %v82
    %160 = vmatprep.subr.mxu0 %v81
    %161 = vmatpush1.msra.mxu0 %v80
    %162 = vmatprep.subr.mxu0 %v79
    %163 = vmatpush1.msra.mxu0 %v78
    %164 = vmatprep.subr.mxu0 0.0
    %165 = vmatpush2.msra.mxu0 0.0
    %166 = vmatprep.subr.mxu0 0.0
    %167 = vmatpush2.msra.mxu0 0.0
    %168 = vmatprep.subr.mxu0 0.0
    %169 = vmatpush2.msra.mxu0 0.0
    %170 = vmatprep.subr.mxu0 0.0
    %171 = vmatpush2.msra.mxu0 0.0
    %172 = vmatprep.subr.mxu0 0.0
    %173 = vmatpush2.msra.mxu0 0.0
    %174 = vmatprep.subr.mxu0 0.0
    %175 = vmatpush2.msra.mxu0 0.0
    %176 = vmatprep.subr.mxu0 0.0
    %177 = vmatpush2.msra.mxu0 0.0
    %178 = vmatprep.subr.mxu0 0.0
    %179 = vmatpush2.msra.mxu0 0.0
    %180 = vmatprep.subr.mxu0 0.0
    %181 = vmatpush2.msra.mxu0 0.0
    %182 = vmatprep.subr.mxu0 0.0
    %183 = vmatpush2.msra.mxu0 0.0
    %184 = vmatprep.subr.mxu0 0.0
    %185 = vmatpush2.msra.mxu0 0.0
    %186 = vmatprep.subr.mxu0 0.0
    %187 = vmatpush2.msra.mxu0 0.0
    %188 = vmatprep.subr.mxu0 0.0
    %189 = vmatpush2.msra.mxu0 0.0
    %190 = vmatprep.subr.mxu0 0.0
    %191 = vmatpush2.msra.mxu0 0.0
    %192 = vmatprep.subr.mxu0 0.0
    %193 = vmatpush2.msra.mxu0 0.0
    %194 = vmatprep.subr.mxu0 0.0
    %195 = vmatpush2.msra.mxu0 0.0
    %196 = vmatprep.mubr.f32.mxu0 0.0
    %197 = vmatmul.mubr.f32.gmra.mxu0 %v102
    %v198 = vpop.f32.mrf.mxu0
    %v199 = vadd.f32 0.0, %v198
    %v200 = vpop.f32.mrf.mxu0
    %v201 = vadd.f32 0.0, %v200
    %202 = vmatprep.mubr.f32.mxu0 0.0
    %203 = vmatmul.mubr.f32.gmra.mxu0 %v105
    %v204 = vpop.f32.mrf.mxu0
    %v205 = vadd.f32 0.0, %v204
    %v206 = vpop.f32.mrf.mxu0
    %v207 = vadd.f32 0.0, %v206
    %208 = vmatprep.mubr.f32.mxu0 0.0
    %209 = vmatmul.mubr.f32.gmra.mxu0 %v108
    %v210 = vpop.f32.mrf.mxu0
    %v211 = vadd.f32 0.0, %v210
    %v212 = vpop.f32.mrf.mxu0
    %v213 = vadd.f32 0.0, %v212
    %214 = vmatprep.mubr.f32.mxu0 0.0
    %215 = vmatmul.mubr.f32.gmra.mxu0 %v111
    %v216 = vpop.f32.mrf.mxu0
    %v217 = vadd.f32 0.0, %v216
    %v218 = vpop.f32.mrf.mxu0
    %v219 = vadd.f32 0.0, %v218
    %220 = vmatprep.mubr.f32.mxu0 0.0
    %221 = vmatmul.mubr.f32.gmra.mxu0 %v114
    %v222 = vpop.f32.mrf.mxu0
    %v223 = vadd.f32 0.0, %v222
    %v224 = vpop.f32.mrf.mxu0
    %v225 = vadd.f32 0.0, %v224
    %226 = vmatprep.mubr.f32.mxu0 0.0
    %227 = vmatmul.mubr.f32.gmra.mxu0 %v117
    %v228 = vpop.f32.mrf.mxu0
    %v229 = vadd.f32 0.0, %v228
    %v230 = vpop.f32.mrf.mxu0
    %v231 = vadd.f32 0.0, %v230
    %232 = vmatprep.mubr.f32.mxu0 0.0
    %233 = vmatmul.mubr.f32.gmra.mxu0 %v120
    %v234 = vpop.f32.mrf.mxu0
    %v235 = vadd.f32 0.0, %v234
    %v236 = vpop.f32.mrf.mxu0
    %v237 = vadd.f32 0.0, %v236
    %238 = vmatprep.mubr.f32.mxu0 0.0
    %239 = vmatmul.mubr.f32.gmra.mxu0 %v123
    %v240 = vpop.f32.mrf.mxu0
    %v241 = vadd.f32 0.0, %v240
    %v242 = vpop.f32.mrf.mxu0
    %v243 = vadd.f32 0.0, %v242
    %244 = vdwg.mxu0
    %v246 = vsel %vm100, %v39, 0
    %v249 = vsel %vm100, %v40, 0
    %v252 = vsel %vm100, %v41, 0
    %v255 = vsel %vm100, %v42, 0
    %v258 = vsel %vm100, %v43, 0
    %v261 = vsel %vm100, %v44, 0
    %v264 = vsel %vm100, %v45, 0
    %v267 = vsel %vm100, %v46, 0
    %v270 = vsel %vm125, %v67, 0
    %v273 = vsel %vm125, %v68, 0
    %275 = vmatprep.subr.mxu0 0.0
    %276 = vmatpush1.msra.mxu0 0.0
    %277 = vmatprep.subr.mxu0 0.0
    %278 = vmatpush1.msra.mxu0 0.0
    %279 = vmatprep.subr.mxu0 0.0
    %280 = vmatpush1.msra.mxu0 0.0
    %281 = vmatprep.subr.mxu0 0.0
    %282 = vmatpush1.msra.mxu0 0.0
    %283 = vmatprep.subr.mxu0 0.0
    %284 = vmatpush1.msra.mxu0 0.0
    %285 = vmatprep.subr.mxu0 %v273
    %286 = vmatpush1.msra.mxu0 %v270
    %287 = vmatprep.subr.mxu0 %v66
    %288 = vmatpush1.msra.mxu0 %v65
    %289 = vmatprep.subr.mxu0 %v64
    %290 = vmatpush1.msra.mxu0 %v63
    %291 = vmatprep.subr.mxu0 %v62
    %292 = vmatpush1.msra.mxu0 %v61
    %293 = vmatprep.subr.mxu0 %v60
    %294 = vmatpush1.msra.mxu0 %v59
    %295 = vmatprep.subr.mxu0 %v58
    %296 = vmatpush1.msra.mxu0 %v57
    %297 = vmatprep.subr.mxu0 %v56
    %298 = vmatpush1.msra.mxu0 %v55
    %299 = vmatprep.subr.mxu0 %v54
    %300 = vmatpush1.msra.mxu0 %v53
    %301 = vmatprep.subr.mxu0 %v52
    %302 = vmatpush1.msra.mxu0 %v51
    %303 = vmatprep.subr.mxu0 %v50
    %304 = vmatpush1.msra.mxu0 %v49
    %305 = vmatprep.subr.mxu0 %v48
    %306 = vmatpush1.msra.mxu0 %v47
    %307 = vmatprep.subr.mxu0 0.0
    %308 = vmatpush2.msra.mxu0 0.0
    %309 = vmatprep.subr.mxu0 0.0
    %310 = vmatpush2.msra.mxu0 0.0
    %311 = vmatprep.subr.mxu0 0.0
    %312 = vmatpush2.msra.mxu0 0.0
    %313 = vmatprep.subr.mxu0 0.0
    %314 = vmatpush2.msra.mxu0 0.0
    %315 = vmatprep.subr.mxu0 0.0
    %316 = vmatpush2.msra.mxu0 0.0
    %317 = vmatprep.subr.mxu0 0.0
    %318 = vmatpush2.msra.mxu0 0.0
    %319 = vmatprep.subr.mxu0 0.0
    %320 = vmatpush2.msra.mxu0 0.0
    %321 = vmatprep.subr.mxu0 0.0
    %322 = vmatpush2.msra.mxu0 0.0
    %323 = vmatprep.subr.mxu0 0.0
    %324 = vmatpush2.msra.mxu0 0.0
    %325 = vmatprep.subr.mxu0 0.0
    %326 = vmatpush2.msra.mxu0 0.0
    %327 = vmatprep.subr.mxu0 0.0
    %328 = vmatpush2.msra.mxu0 0.0
    %329 = vmatprep.subr.mxu0 0.0
    %330 = vmatpush2.msra.mxu0 0.0
    %331 = vmatprep.subr.mxu0 0.0
    %332 = vmatpush2.msra.mxu0 0.0
    %333 = vmatprep.subr.mxu0 0.0
    %334 = vmatpush2.msra.mxu0 0.0
    %335 = vmatprep.subr.mxu0 0.0
    %336 = vmatpush2.msra.mxu0 0.0
    %337 = vmatprep.subr.mxu0 0.0
    %338 = vmatpush2.msra.mxu0 0.0
    %339 = vmatprep.mubr.f32.mxu0 0.0
    %340 = vmatmul.mubr.f32.gmra.mxu0 %v246
    %v341 = vpop.f32.mrf.mxu0
    %v342 = vadd.f32 %v199, %v341
    %v343 = vpop.f32.mrf.mxu0
    %v344 = vadd.f32 %v201, %v343
    %345 = vmatprep.mubr.f32.mxu0 0.0
    %346 = vmatmul.mubr.f32.gmra.mxu0 %v249
    %v347 = vpop.f32.mrf.mxu0
    %v348 = vadd.f32 %v205, %v347
    %v349 = vpop.f32.mrf.mxu0
    %v350 = vadd.f32 %v207, %v349
    %351 = vmatprep.mubr.f32.mxu0 0.0
    %352 = vmatmul.mubr.f32.gmra.mxu0 %v252
    %v353 = vpop.f32.mrf.mxu0
    %v354 = vadd.f32 %v211, %v353
    %v355 = vpop.f32.mrf.mxu0
    %v356 = vadd.f32 %v213, %v355
    %357 = vmatprep.mubr.f32.mxu0 0.0
    %358 = vmatmul.mubr.f32.gmra.mxu0 %v255
    %v359 = vpop.f32.mrf.mxu0
    %v360 = vadd.f32 %v217, %v359
    %v361 = vpop.f32.mrf.mxu0
    %v362 = vadd.f32 %v219, %v361
    %363 = vmatprep.mubr.f32.mxu0 0.0
    %364 = vmatmul.mubr.f32.gmra.mxu0 %v258
    %v365 = vpop.f32.mrf.mxu0
    %v366 = vadd.f32 %v223, %v365
    %v367 = vpop.f32.mrf.mxu0
    %v368 = vadd.f32 %v225, %v367
    %369 = vmatprep.mubr.f32.mxu0 0.0
    %370 = vmatmul.mubr.f32.gmra.mxu0 %v261
    %v371 = vpop.f32.mrf.mxu0
    %v372 = vadd.f32 %v229, %v371
    %v373 = vpop.f32.mrf.mxu0
    %v374 = vadd.f32 %v231, %v373
    %375 = vmatprep.mubr.f32.mxu0 0.0
    %376 = vmatmul.mubr.f32.gmra.mxu0 %v264
    %v377 = vpop.f32.mrf.mxu0
    %v378 = vadd.f32 %v235, %v377
    %v379 = vpop.f32.mrf.mxu0
    %v380 = vadd.f32 %v237, %v379
    %381 = vmatprep.mubr.f32.mxu0 0.0
    %382 = vmatmul.mubr.f32.gmra.mxu0 %v267
    %v383 = vpop.f32.mrf.mxu0
    %v384 = vadd.f32 %v241, %v383
    %v385 = vpop.f32.mrf.mxu0
    %v386 = vadd.f32 %v243, %v385
    %387 = vdwg.mxu0
    %v388 = vld [vmem:[%s0 + $0x2] sm:$0xff]
    %v389 = vld [vmem:[%s0 + $0xa] sm:$0xff]
    %v390 = vld [vmem:[%s0 + $0x12] sm:$0xff]
    %v391 = vld [vmem:[%s0 + $0x1a] sm:$0xff]
    %v392 = vld [vmem:[%s0 + $0x2a] sm:$0xff]
    %v393 = vld [vmem:[%s0 + $0x32] sm:$0xff]
    %v394 = vld [vmem:[%s0 + $0x3a] sm:$0xff]
    %v395 = vld [vmem:[%s0 + $0x42] sm:$0xff]
    %s396 = scalar_lea.vmem %s1, 352
    %v397 = vld [vmem:[%s396] sm:$0xff]
    %v398 = vld [vmem:[%s396 + $0x8] sm:$0xff]
    %v399 = vld [vmem:[%s396 + $0x10] sm:$0xff]
    %v400 = vld [vmem:[%s396 + $0x18] sm:$0xff]
    %v401 = vld [vmem:[%s396 + $0x20] sm:$0xff]
    %v402 = vld [vmem:[%s396 + $0x28] sm:$0xff]
    %v403 = vld [vmem:[%s396 + $0x30] sm:$0xff]
    %v404 = vld [vmem:[%s396 + $0x38] sm:$0xff]
    %v405 = vld [vmem:[%s396 + $0x40] sm:$0xff]
    %v406 = vld [vmem:[%s396 + $0x48] sm:$0xff]
    %v407 = vld [vmem:[%s396 + $0x50] sm:$0xff]
    %v408 = vld [vmem:[%s396 + $0x58] sm:$0xff]
    %v409 = vld [vmem:[%s396 + $0x60] sm:$0xff]
    %v410 = vld [vmem:[%s396 + $0x68] sm:$0xff]
    %v411 = vld [vmem:[%s396 + $0x70] sm:$0xff]
    %v412 = vld [vmem:[%s396 + $0x78] sm:$0xff]
    %v413 = vld [vmem:[%s396 + $0x80] sm:$0xff]
    %v414 = vld [vmem:[%s396 + $0x88] sm:$0xff]
    %v415 = vld [vmem:[%s396 + $0x90] sm:$0xff]
    %v416 = vld [vmem:[%s396 + $0x98] sm:$0xff]
    %v417 = vld [vmem:[%s396 + $0xa0] sm:$0xf]
    %v418 = vld [vmem:[%s396 + $0xa8] sm:$0xf]
    %v420 = vsel %vm100, %v388, 0
    %v423 = vsel %vm100, %v389, 0
    %v426 = vsel %vm100, %v390, 0
    %v429 = vsel %vm100, %v391, 0
    %v432 = vsel %vm100, %v392, 0
    %v435 = vsel %vm100, %v393, 0
    %v438 = vsel %vm100, %v394, 0
    %v441 = vsel %vm100, %v395, 0
    %v444 = vsel %vm125, %v417, 0
    %v447 = vsel %vm125, %v418, 0
    %449 = vmatprep.subr.mxu0 0.0
    %450 = vmatpush1.msra.mxu0 0.0
    %451 = vmatprep.subr.mxu0 0.0
    %452 = vmatpush1.msra.mxu0 0.0
    %453 = vmatprep.subr.mxu0 0.0
    %454 = vmatpush1.msra.mxu0 0.0
    %455 = vmatprep.subr.mxu0 0.0
    %456 = vmatpush1.msra.mxu0 0.0
    %457 = vmatprep.subr.mxu0 0.0
    %458 = vmatpush1.msra.mxu0 0.0
    %459 = vmatprep.subr.mxu0 %v447
    %460 = vmatpush1.msra.mxu0 %v444
    %461 = vmatprep.subr.mxu0 %v416
    %462 = vmatpush1.msra.mxu0 %v415
    %463 = vmatprep.subr.mxu0 %v414
    %464 = vmatpush1.msra.mxu0 %v413
    %465 = vmatprep.subr.mxu0 %v412
    %466 = vmatpush1.msra.mxu0 %v411
    %467 = vmatprep.subr.mxu0 %v410
    %468 = vmatpush1.msra.mxu0 %v409
    %469 = vmatprep.subr.mxu0 %v408
    %470 = vmatpush1.msra.mxu0 %v407
    %471 = vmatprep.subr.mxu0 %v406
    %472 = vmatpush1.msra.mxu0 %v405
    %473 = vmatprep.subr.mxu0 %v404
    %474 = vmatpush1.msra.mxu0 %v403
    %475 = vmatprep.subr.mxu0 %v402
    %476 = vmatpush1.msra.mxu0 %v401
    %477 = vmatprep.subr.mxu0 %v400
    %478 = vmatpush1.msra.mxu0 %v399
    %479 = vmatprep.subr.mxu0 %v398
    %480 = vmatpush1.msra.mxu0 %v397
    %481 = vmatprep.subr.mxu0 0.0
    %482 = vmatpush2.msra.mxu0 0.0
    %483 = vmatprep.subr.mxu0 0.0
    %484 = vmatpush2.msra.mxu0 0.0
    %485 = vmatprep.subr.mxu0 0.0
    %486 = vmatpush2.msra.mxu0 0.0
    %487 = vmatprep.subr.mxu0 0.0
    %488 = vmatpush2.msra.mxu0 0.0
    %489 = vmatprep.subr.mxu0 0.0
    %490 = vmatpush2.msra.mxu0 0.0
    %491 = vmatprep.subr.mxu0 0.0
    %492 = vmatpush2.msra.mxu0 0.0
    %493 = vmatprep.subr.mxu0 0.0
    %494 = vmatpush2.msra.mxu0 0.0
    %495 = vmatprep.subr.mxu0 0.0
    %496 = vmatpush2.msra.mxu0 0.0
    %497 = vmatprep.subr.mxu0 0.0
    %498 = vmatpush2.msra.mxu0 0.0
    %499 = vmatprep.subr.mxu0 0.0
    %500 = vmatpush2.msra.mxu0 0.0
    %501 = vmatprep.subr.mxu0 0.0
    %502 = vmatpush2.msra.mxu0 0.0
    %503 = vmatprep.subr.mxu0 0.0
    %504 = vmatpush2.msra.mxu0 0.0
    %505 = vmatprep.subr.mxu0 0.0
    %506 = vmatpush2.msra.mxu0 0.0
    %507 = vmatprep.subr.mxu0 0.0
    %508 = vmatpush2.msra.mxu0 0.0
    %509 = vmatprep.subr.mxu0 0.0
    %510 = vmatpush2.msra.mxu0 0.0
    %511 = vmatprep.subr.mxu0 0.0
    %512 = vmatpush2.msra.mxu0 0.0
    %513 = vmatprep.mubr.f32.mxu0 0.0
    %514 = vmatmul.mubr.f32.gmra.mxu0 %v420
    %v515 = vpop.f32.mrf.mxu0
    %v516 = vadd.f32 0.0, %v515
    %v517 = vpop.f32.mrf.mxu0
    %v518 = vadd.f32 0.0, %v517
    %519 = vmatprep.mubr.f32.mxu0 0.0
    %520 = vmatmul.mubr.f32.gmra.mxu0 %v423
    %v521 = vpop.f32.mrf.mxu0
    %v522 = vadd.f32 0.0, %v521
    %v523 = vpop.f32.mrf.mxu0
    %v524 = vadd.f32 0.0, %v523
    %525 = vmatprep.mubr.f32.mxu0 0.0
    %526 = vmatmul.mubr.f32.gmra.mxu0 %v426
    %v527 = vpop.f32.mrf.mxu0
    %v528 = vadd.f32 0.0, %v527
    %v529 = vpop.f32.mrf.mxu0
    %v530 = vadd.f32 0.0, %v529
    %531 = vmatprep.mubr.f32.mxu0 0.0
    %532 = vmatmul.mubr.f32.gmra.mxu0 %v429
    %v533 = vpop.f32.mrf.mxu0
    %v534 = vadd.f32 0.0, %v533
    %v535 = vpop.f32.mrf.mxu0
    %v536 = vadd.f32 0.0, %v535
    %537 = vmatprep.mubr.f32.mxu0 0.0
    %538 = vmatmul.mubr.f32.gmra.mxu0 %v432
    %v539 = vpop.f32.mrf.mxu0
    %v540 = vadd.f32 0.0, %v539
    %v541 = vpop.f32.mrf.mxu0
    %v542 = vadd.f32 0.0, %v541
    %543 = vmatprep.mubr.f32.mxu0 0.0
    %544 = vmatmul.mubr.f32.gmra.mxu0 %v435
    %v545 = vpop.f32.mrf.mxu0
    %v546 = vadd.f32 0.0, %v545
    %v547 = vpop.f32.mrf.mxu0
    %v548 = vadd.f32 0.0, %v547
    %549 = vmatprep.mubr.f32.mxu0 0.0
    %550 = vmatmul.mubr.f32.gmra.mxu0 %v438
    %v551 = vpop.f32.mrf.mxu0
    %v552 = vadd.f32 0.0, %v551
    %v553 = vpop.f32.mrf.mxu0
    %v554 = vadd.f32 0.0, %v553
    %555 = vmatprep.mubr.f32.mxu0 0.0
    %556 = vmatmul.mubr.f32.gmra.mxu0 %v441
    %v557 = vpop.f32.mrf.mxu0
    %v558 = vadd.f32 0.0, %v557
    %v559 = vpop.f32.mrf.mxu0
    %v560 = vadd.f32 0.0, %v559
    %561 = vdwg.mxu0
    %v562 = vadd.f32 %v342, %v516
    %v563 = vadd.f32 %v344, %v518
    %v564 = vadd.f32 %v348, %v522
    %v565 = vadd.f32 %v350, %v524
    %v566 = vadd.f32 %v354, %v528
    %v567 = vadd.f32 %v356, %v530
    %v568 = vadd.f32 %v360, %v534
    %v569 = vadd.f32 %v362, %v536
    %v570 = vadd.f32 %v366, %v540
    %v571 = vadd.f32 %v368, %v542
    %v572 = vadd.f32 %v372, %v546
    %v573 = vadd.f32 %v374, %v548
    %v574 = vadd.f32 %v378, %v552
    %v575 = vadd.f32 %v380, %v554
    %v576 = vadd.f32 %v384, %v558
    %v577 = vadd.f32 %v386, %v560
    %v578 = vld [vmem:[%s0 + $0x3] sm:$0xff]
    %v579 = vld [vmem:[%s0 + $0xb] sm:$0xff]
    %v580 = vld [vmem:[%s0 + $0x13] sm:$0xff]
    %v581 = vld [vmem:[%s0 + $0x1b] sm:$0xff]
    %v582 = vld [vmem:[%s0 + $0x2b] sm:$0xff]
    %v583 = vld [vmem:[%s0 + $0x33] sm:$0xff]
    %v584 = vld [vmem:[%s0 + $0x3b] sm:$0xff]
    %v585 = vld [vmem:[%s0 + $0x43] sm:$0xff]
    %s586 = scalar_lea.vmem %s1, 528
    %v587 = vld [vmem:[%s586] sm:$0xff]
    %v588 = vld [vmem:[%s586 + $0x8] sm:$0xff]
    %v589 = vld [vmem:[%s586 + $0x10] sm:$0xff]
    %v590 = vld [vmem:[%s586 + $0x18] sm:$0xff]
    %v591 = vld [vmem:[%s586 + $0x20] sm:$0xff]
    %v592 = vld [vmem:[%s586 + $0x28] sm:$0xff]
    %v593 = vld [vmem:[%s586 + $0x30] sm:$0xff]
    %v594 = vld [vmem:[%s586 + $0x38] sm:$0xff]
    %v595 = vld [vmem:[%s586 + $0x40] sm:$0xff]
    %v596 = vld [vmem:[%s586 + $0x48] sm:$0xff]
    %v597 = vld [vmem:[%s586 + $0x50] sm:$0xff]
    %v598 = vld [vmem:[%s586 + $0x58] sm:$0xff]
    %v599 = vld [vmem:[%s586 + $0x60] sm:$0xff]
    %v600 = vld [vmem:[%s586 + $0x68] sm:$0xff]
    %v601 = vld [vmem:[%s586 + $0x70] sm:$0xff]
    %v602 = vld [vmem:[%s586 + $0x78] sm:$0xff]
    %v603 = vld [vmem:[%s586 + $0x80] sm:$0xff]
    %v604 = vld [vmem:[%s586 + $0x88] sm:$0xff]
    %v605 = vld [vmem:[%s586 + $0x90] sm:$0xff]
    %v606 = vld [vmem:[%s586 + $0x98] sm:$0xff]
    %v607 = vld [vmem:[%s586 + $0xa0] sm:$0xf]
    %v608 = vld [vmem:[%s586 + $0xa8] sm:$0xf]
    %v610 = vsel %vm100, %v578, 0
    %v613 = vsel %vm100, %v579, 0
    %v616 = vsel %vm100, %v580, 0
    %v619 = vsel %vm100, %v581, 0
    %v622 = vsel %vm100, %v582, 0
    %v625 = vsel %vm100, %v583, 0
    %v628 = vsel %vm100, %v584, 0
    %v631 = vsel %vm100, %v585, 0
    %v634 = vsel %vm125, %v607, 0
    %v637 = vsel %vm125, %v608, 0
    %639 = vmatprep.subr.mxu0 0.0
    %640 = vmatpush1.msra.mxu0 0.0
    %641 = vmatprep.subr.mxu0 0.0
    %642 = vmatpush1.msra.mxu0 0.0
    %643 = vmatprep.subr.mxu0 0.0
    %644 = vmatpush1.msra.mxu0 0.0
    %645 = vmatprep.subr.mxu0 0.0
    %646 = vmatpush1.msra.mxu0 0.0
    %647 = vmatprep.subr.mxu0 0.0
    %648 = vmatpush1.msra.mxu0 0.0
    %649 = vmatprep.subr.mxu0 %v637
    %650 = vmatpush1.msra.mxu0 %v634
    %651 = vmatprep.subr.mxu0 %v606
    %652 = vmatpush1.msra.mxu0 %v605
    %653 = vmatprep.subr.mxu0 %v604
    %654 = vmatpush1.msra.mxu0 %v603
    %655 = vmatprep.subr.mxu0 %v602
    %656 = vmatpush1.msra.mxu0 %v601
    %657 = vmatprep.subr.mxu0 %v600
    %658 = vmatpush1.msra.mxu0 %v599
    %659 = vmatprep.subr.mxu0 %v598
    %660 = vmatpush1.msra.mxu0 %v597
    %661 = vmatprep.subr.mxu0 %v596
    %662 = vmatpush1.msra.mxu0 %v595
    %663 = vmatprep.subr.mxu0 %v594
    %664 = vmatpush1.msra.mxu0 %v593
    %665 = vmatprep.subr.mxu0 %v592
    %666 = vmatpush1.msra.mxu0 %v591
    %667 = vmatprep.subr.mxu0 %v590
    %668 = vmatpush1.msra.mxu0 %v589
    %669 = vmatprep.subr.mxu0 %v588
    %670 = vmatpush1.msra.mxu0 %v587
    %671 = vmatprep.subr.mxu0 0.0
    %672 = vmatpush2.msra.mxu0 0.0
    %673 = vmatprep.subr.mxu0 0.0
    %674 = vmatpush2.msra.mxu0 0.0
    %675 = vmatprep.subr.mxu0 0.0
    %676 = vmatpush2.msra.mxu0 0.0
    %677 = vmatprep.subr.mxu0 0.0
    %678 = vmatpush2.msra.mxu0 0.0
    %679 = vmatprep.subr.mxu0 0.0
    %680 = vmatpush2.msra.mxu0 0.0
    %681 = vmatprep.subr.mxu0 0.0
    %682 = vmatpush2.msra.mxu0 0.0
    %683 = vmatprep.subr.mxu0 0.0
    %684 = vmatpush2.msra.mxu0 0.0
    %685 = vmatprep.subr.mxu0 0.0
    %686 = vmatpush2.msra.mxu0 0.0
    %687 = vmatprep.subr.mxu0 0.0
    %688 = vmatpush2.msra.mxu0 0.0
    %689 = vmatprep.subr.mxu0 0.0
    %690 = vmatpush2.msra.mxu0 0.0
    %691 = vmatprep.subr.mxu0 0.0
    %692 = vmatpush2.msra.mxu0 0.0
    %693 = vmatprep.subr.mxu0 0.0
    %694 = vmatpush2.msra.mxu0 0.0
    %695 = vmatprep.subr.mxu0 0.0
    %696 = vmatpush2.msra.mxu0 0.0
    %697 = vmatprep.subr.mxu0 0.0
    %698 = vmatpush2.msra.mxu0 0.0
    %699 = vmatprep.subr.mxu0 0.0
    %700 = vmatpush2.msra.mxu0 0.0
    %701 = vmatprep.subr.mxu0 0.0
    %702 = vmatpush2.msra.mxu0 0.0
    %703 = vmatprep.mubr.f32.mxu0 0.0
    %704 = vmatmul.mubr.f32.gmra.mxu0 %v610
    %v705 = vpop.f32.mrf.mxu0
    %v706 = vadd.f32 0.0, %v705
    %v707 = vpop.f32.mrf.mxu0
    %v708 = vadd.f32 0.0, %v707
    %709 = vmatprep.mubr.f32.mxu0 0.0
    %710 = vmatmul.mubr.f32.gmra.mxu0 %v613
    %v711 = vpop.f32.mrf.mxu0
    %v712 = vadd.f32 0.0, %v711
    %v713 = vpop.f32.mrf.mxu0
    %v714 = vadd.f32 0.0, %v713
    %715 = vmatprep.mubr.f32.mxu0 0.0
    %716 = vmatmul.mubr.f32.gmra.mxu0 %v616
    %v717 = vpop.f32.mrf.mxu0
    %v718 = vadd.f32 0.0, %v717
    %v719 = vpop.f32.mrf.mxu0
    %v720 = vadd.f32 0.0, %v719
    %721 = vmatprep.mubr.f32.mxu0 0.0
    %722 = vmatmul.mubr.f32.gmra.mxu0 %v619
    %v723 = vpop.f32.mrf.mxu0
    %v724 = vadd.f32 0.0, %v723
    %v725 = vpop.f32.mrf.mxu0
    %v726 = vadd.f32 0.0, %v725
    %727 = vmatprep.mubr.f32.mxu0 0.0
    %728 = vmatmul.mubr.f32.gmra.mxu0 %v622
    %v729 = vpop.f32.mrf.mxu0
    %v730 = vadd.f32 0.0, %v729
    %v731 = vpop.f32.mrf.mxu0
    %v732 = vadd.f32 0.0, %v731
    %733 = vmatprep.mubr.f32.mxu0 0.0
    %734 = vmatmul.mubr.f32.gmra.mxu0 %v625
    %v735 = vpop.f32.mrf.mxu0
    %v736 = vadd.f32 0.0, %v735
    %v737 = vpop.f32.mrf.mxu0
    %v738 = vadd.f32 0.0, %v737
    %739 = vmatprep.mubr.f32.mxu0 0.0
    %740 = vmatmul.mubr.f32.gmra.mxu0 %v628
    %v741 = vpop.f32.mrf.mxu0
    %v742 = vadd.f32 0.0, %v741
    %v743 = vpop.f32.mrf.mxu0
    %v744 = vadd.f32 0.0, %v743
    %745 = vmatprep.mubr.f32.mxu0 0.0
    %746 = vmatmul.mubr.f32.gmra.mxu0 %v631
    %v747 = vpop.f32.mrf.mxu0
    %v748 = vadd.f32 0.0, %v747
    %v749 = vpop.f32.mrf.mxu0
    %v750 = vadd.f32 0.0, %v749
    %751 = vdwg.mxu0
    %v752 = vadd.f32 %v562, %v706
    %v753 = vadd.f32 %v563, %v708
    %v754 = vadd.f32 %v564, %v712
    %v755 = vadd.f32 %v565, %v714
    %v756 = vadd.f32 %v566, %v718
    %v757 = vadd.f32 %v567, %v720
    %v758 = vadd.f32 %v568, %v724
    %v759 = vadd.f32 %v569, %v726
    %v760 = vadd.f32 %v570, %v730
    %v761 = vadd.f32 %v571, %v732
    %v762 = vadd.f32 %v572, %v736
    %v763 = vadd.f32 %v573, %v738
    %v764 = vadd.f32 %v574, %v742
    %v765 = vadd.f32 %v575, %v744
    %v766 = vadd.f32 %v576, %v748
    %v767 = vadd.f32 %v577, %v750
    %v768 = vld [vmem:[%s0 + $0x4] sm:$0xff]
    %v769 = vld [vmem:[%s0 + $0xc] sm:$0xff]
    %v770 = vld [vmem:[%s0 + $0x14] sm:$0xff]
    %v771 = vld [vmem:[%s0 + $0x1c] sm:$0xff]
    %v772 = vld [vmem:[%s0 + $0x2c] sm:$0xff]
    %v773 = vld [vmem:[%s0 + $0x34] sm:$0xff]
    %v774 = vld [vmem:[%s0 + $0x3c] sm:$0xff]
    %v775 = vld [vmem:[%s0 + $0x44] sm:$0xff]
    %s776 = scalar_lea.vmem %s1, 704
    %v777 = vld [vmem:[%s776] sm:$0xff]
    %v778 = vld [vmem:[%s776 + $0x8] sm:$0xff]
    %v779 = vld [vmem:[%s776 + $0x10] sm:$0xff]
    %v780 = vld [vmem:[%s776 + $0x18] sm:$0xff]
    %v781 = vld [vmem:[%s776 + $0x20] sm:$0xff]
    %v782 = vld [vmem:[%s776 + $0x28] sm:$0xff]
    %v783 = vld [vmem:[%s776 + $0x30] sm:$0xff]
    %v784 = vld [vmem:[%s776 + $0x38] sm:$0xff]
    %v785 = vld [vmem:[%s776 + $0x40] sm:$0xff]
    %v786 = vld [vmem:[%s776 + $0x48] sm:$0xff]
    %v787 = vld [vmem:[%s776 + $0x50] sm:$0xff]
    %v788 = vld [vmem:[%s776 + $0x58] sm:$0xff]
    %v789 = vld [vmem:[%s776 + $0x60] sm:$0xff]
    %v790 = vld [vmem:[%s776 + $0x68] sm:$0xff]
    %v791 = vld [vmem:[%s776 + $0x70] sm:$0xff]
    %v792 = vld [vmem:[%s776 + $0x78] sm:$0xff]
    %v793 = vld [vmem:[%s776 + $0x80] sm:$0xff]
    %v794 = vld [vmem:[%s776 + $0x88] sm:$0xff]
    %v795 = vld [vmem:[%s776 + $0x90] sm:$0xff]
    %v796 = vld [vmem:[%s776 + $0x98] sm:$0xff]
    %v797 = vld [vmem:[%s776 + $0xa0] sm:$0xf]
    %v798 = vld [vmem:[%s776 + $0xa8] sm:$0xf]
    %v800 = vsel %vm100, %v768, 0
    %v803 = vsel %vm100, %v769, 0
    %v806 = vsel %vm100, %v770, 0
    %v809 = vsel %vm100, %v771, 0
    %v812 = vsel %vm100, %v772, 0
    %v815 = vsel %vm100, %v773, 0
    %v818 = vsel %vm100, %v774, 0
    %v821 = vsel %vm100, %v775, 0
    %v824 = vsel %vm125, %v797, 0
    %v827 = vsel %vm125, %v798, 0
    %829 = vmatprep.subr.mxu0 0.0
    %830 = vmatpush1.msra.mxu0 0.0
    %831 = vmatprep.subr.mxu0 0.0
    %832 = vmatpush1.msra.mxu0 0.0
    %833 = vmatprep.subr.mxu0 0.0
    %834 = vmatpush1.msra.mxu0 0.0
    %835 = vmatprep.subr.mxu0 0.0
    %836 = vmatpush1.msra.mxu0 0.0
    %837 = vmatprep.subr.mxu0 0.0
    %838 = vmatpush1.msra.mxu0 0.0
    %839 = vmatprep.subr.mxu0 %v827
    %840 = vmatpush1.msra.mxu0 %v824
    %841 = vmatprep.subr.mxu0 %v796
    %842 = vmatpush1.msra.mxu0 %v795
    %843 = vmatprep.subr.mxu0 %v794
    %844 = vmatpush1.msra.mxu0 %v793
    %845 = vmatprep.subr.mxu0 %v792
    %846 = vmatpush1.msra.mxu0 %v791
    %847 = vmatprep.subr.mxu0 %v790
    %848 = vmatpush1.msra.mxu0 %v789
    %849 = vmatprep.subr.mxu0 %v788
    %850 = vmatpush1.msra.mxu0 %v787
    %851 = vmatprep.subr.mxu0 %v786
    %852 = vmatpush1.msra.mxu0 %v785
    %853 = vmatprep.subr.mxu0 %v784
    %854 = vmatpush1.msra.mxu0 %v783
    %855 = vmatprep.subr.mxu0 %v782
    %856 = vmatpush1.msra.mxu0 %v781
    %857 = vmatprep.subr.mxu0 %v780
    %858 = vmatpush1.msra.mxu0 %v779
    %859 = vmatprep.subr.mxu0 %v778
    %860 = vmatpush1.msra.mxu0 %v777
    %861 = vmatprep.subr.mxu0 0.0
    %862 = vmatpush2.msra.mxu0 0.0
    %863 = vmatprep.subr.mxu0 0.0
    %864 = vmatpush2.msra.mxu0 0.0
    %865 = vmatprep.subr.mxu0 0.0
    %866 = vmatpush2.msra.mxu0 0.0
    %867 = vmatprep.subr.mxu0 0.0
    %868 = vmatpush2.msra.mxu0 0.0
    %869 = vmatprep.subr.mxu0 0.0
    %870 = vmatpush2.msra.mxu0 0.0
    %871 = vmatprep.subr.mxu0 0.0
    %872 = vmatpush2.msra.mxu0 0.0
    %873 = vmatprep.subr.mxu0 0.0
    %874 = vmatpush2.msra.mxu0 0.0
    %875 = vmatprep.subr.mxu0 0.0
    %876 = vmatpush2.msra.mxu0 0.0
    %877 = vmatprep.subr.mxu0 0.0
    %878 = vmatpush2.msra.mxu0 0.0
    %879 = vmatprep.subr.mxu0 0.0
    %880 = vmatpush2.msra.mxu0 0.0
    %881 = vmatprep.subr.mxu0 0.0
    %882 = vmatpush2.msra.mxu0 0.0
    %883 = vmatprep.subr.mxu0 0.0
    %884 = vmatpush2.msra.mxu0 0.0
    %885 = vmatprep.subr.mxu0 0.0
    %886 = vmatpush2.msra.mxu0 0.0
    %887 = vmatprep.subr.mxu0 0.0
    %888 = vmatpush2.msra.mxu0 0.0
    %889 = vmatprep.subr.mxu0 0.0
    %890 = vmatpush2.msra.mxu0 0.0
    %891 = vmatprep.subr.mxu0 0.0
    %892 = vmatpush2.msra.mxu0 0.0
    %893 = vmatprep.mubr.f32.mxu0 0.0
    %894 = vmatmul.mubr.f32.gmra.mxu0 %v800
    %v895 = vpop.f32.mrf.mxu0
    %v896 = vadd.f32 0.0, %v895
    %v897 = vpop.f32.mrf.mxu0
    %v898 = vadd.f32 0.0, %v897
    %899 = vmatprep.mubr.f32.mxu0 0.0
    %900 = vmatmul.mubr.f32.gmra.mxu0 %v803
    %v901 = vpop.f32.mrf.mxu0
    %v902 = vadd.f32 0.0, %v901
    %v903 = vpop.f32.mrf.mxu0
    %v904 = vadd.f32 0.0, %v903
    %905 = vmatprep.mubr.f32.mxu0 0.0
    %906 = vmatmul.mubr.f32.gmra.mxu0 %v806
    %v907 = vpop.f32.mrf.mxu0
    %v908 = vadd.f32 0.0, %v907
    %v909 = vpop.f32.mrf.mxu0
    %v910 = vadd.f32 0.0, %v909
    %911 = vmatprep.mubr.f32.mxu0 0.0
    %912 = vmatmul.mubr.f32.gmra.mxu0 %v809
    %v913 = vpop.f32.mrf.mxu0
    %v914 = vadd.f32 0.0, %v913
    %v915 = vpop.f32.mrf.mxu0
    %v916 = vadd.f32 0.0, %v915
    %917 = vmatprep.mubr.f32.mxu0 0.0
    %918 = vmatmul.mubr.f32.gmra.mxu0 %v812
    %v919 = vpop.f32.mrf.mxu0
    %v920 = vadd.f32 0.0, %v919
    %v921 = vpop.f32.mrf.mxu0
    %v922 = vadd.f32 0.0, %v921
    %923 = vmatprep.mubr.f32.mxu0 0.0
    %924 = vmatmul.mubr.f32.gmra.mxu0 %v815
    %v925 = vpop.f32.mrf.mxu0
    %v926 = vadd.f32 0.0, %v925
    %v927 = vpop.f32.mrf.mxu0
    %v928 = vadd.f32 0.0, %v927
    %929 = vmatprep.mubr.f32.mxu0 0.0
    %930 = vmatmul.mubr.f32.gmra.mxu0 %v818
    %v931 = vpop.f32.mrf.mxu0
    %v932 = vadd.f32 0.0, %v931
    %v933 = vpop.f32.mrf.mxu0
    %v934 = vadd.f32 0.0, %v933
    %935 = vmatprep.mubr.f32.mxu0 0.0
    %936 = vmatmul.mubr.f32.gmra.mxu0 %v821
    %v937 = vpop.f32.mrf.mxu0
    %v938 = vadd.f32 0.0, %v937
    %v939 = vpop.f32.mrf.mxu0
    %v940 = vadd.f32 0.0, %v939
    %941 = vdwg.mxu0
    %v942 = vadd.f32 %v752, %v896
    %v943 = vadd.f32 %v753, %v898
    %v944 = vadd.f32 %v754, %v902
    %v945 = vadd.f32 %v755, %v904
    %v946 = vadd.f32 %v756, %v908
    %v947 = vadd.f32 %v757, %v910
    %v948 = vadd.f32 %v758, %v914
    %v949 = vadd.f32 %v759, %v916
    %v950 = vadd.f32 %v760, %v920
    %v951 = vadd.f32 %v761, %v922
    %v952 = vadd.f32 %v762, %v926
    %v953 = vadd.f32 %v763, %v928
    %v954 = vadd.f32 %v764, %v932
    %v955 = vadd.f32 %v765, %v934
    %v956 = vadd.f32 %v766, %v938
    %v957 = vadd.f32 %v767, %v940
    %v958 = vld [vmem:[%s2] sm:$0x3]
    %v960 = vlaneseq
    %v961 = vshrl.u32 %v960, 7
    %v962 = vsub.s32 0, %v961
    %v963 = vrot.slane %v958, %v962
    %v964 = vlaneseq
    %v965 = vshrl.u32 %v964, 7
    %v966 = vsub.s32 1, %v965
    %v967 = vrot.slane %v958, %v966
    %v970 = vadd.f32 %v942, %v963
    %v971 = vadd.f32 %v943, %v967
    %v972 = vadd.f32 %v944, %v963
    %v973 = vadd.f32 %v945, %v967
    %v974 = vadd.f32 %v946, %v963
    %v975 = vadd.f32 %v947, %v967
    %v976 = vadd.f32 %v948, %v963
    %v977 = vadd.f32 %v949, %v967
    %v978 = vadd.f32 %v950, %v963
    %v979 = vadd.f32 %v951, %v967
    %v980 = vadd.f32 %v952, %v963
    %v981 = vadd.f32 %v953, %v967
    %v982 = vadd.f32 %v954, %v963
    %v983 = vadd.f32 %v955, %v967
    %v984 = vadd.f32 %v956, %v963
    %v985 = vadd.f32 %v957, %v967
    %vm1002 = vcmask 1046528
    %v1003 = vrot.slane %v970, 1
    %v1004 = vrot.slane %v972, 1
    %v1005 = vsel %vm1002, %v1003, %v1004
    %v1006 = vrot.slane %v971, 1
    %v1007 = vrot.slane %v973, 1
    %v1008 = vsel %vm1002, %v1006, %v1007
    %v1009 = vrot.slane %v974, 1
    %v1010 = vsel %vm1002, %v1004, %v1009
    %v1011 = vrot.slane %v975, 1
    %v1012 = vsel %vm1002, %v1007, %v1011
    %v1013 = vrot.slane %v976, 1
    %v1014 = vsel %vm1002, %v1009, %v1013
    %v1015 = vrot.slane %v977, 1
    %v1016 = vsel %vm1002, %v1011, %v1015
    %v1017 = vrot.slane %v978, 1
    %v1018 = vrot.slane %v980, 1
    %v1019 = vsel %vm1002, %v1017, %v1018
    %v1020 = vrot.slane %v979, 1
    %v1021 = vrot.slane %v981, 1
    %v1022 = vsel %vm1002, %v1020, %v1021
    %v1023 = vrot.slane %v982, 1
    %v1024 = vsel %vm1002, %v1018, %v1023
    %v1025 = vrot.slane %v983, 1
    %v1026 = vsel %vm1002, %v1021, %v1025
    %v1027 = vrot.slane %v984, 1
    %v1028 = vsel %vm1002, %v1023, %v1027
    %v1029 = vrot.slane %v985, 1
    %v1030 = vsel %vm1002, %v1025, %v1029
    %v1043 = vmax.f32 %v970, %v1005
    %v1044 = vmax.f32 %v971, %v1008
    %v1045 = vmax.f32 %v972, %v1010
    %v1046 = vmax.f32 %v973, %v1012
    %v1047 = vmax.f32 %v974, %v1014
    %v1048 = vmax.f32 %v975, %v1016
    %v1049 = vmax.f32 %v978, %v1019
    %v1050 = vmax.f32 %v979, %v1022
    %v1051 = vmax.f32 %v980, %v1024
    %v1052 = vmax.f32 %v981, %v1026
    %v1053 = vmax.f32 %v982, %v1028
    %v1054 = vmax.f32 %v983, %v1030
    %1067 = vrot.lane.b32.xlu0 %v1043, 127
    %v1068 = vpop.permute.xlu0 %1067
    %1069 = vrot.lane.b32.xlu0 %v1044, 127
    %v1070 = vpop.permute.xlu0 %1069
    %1071 = vrot.lane.b32.xlu0 %v1045, 127
    %v1072 = vpop.permute.xlu0 %1071
    %1073 = vrot.lane.b32.xlu0 %v1046, 127
    %v1074 = vpop.permute.xlu0 %1073
    %1075 = vrot.lane.b32.xlu0 %v1047, 127
    %v1076 = vpop.permute.xlu0 %1075
    %1077 = vrot.lane.b32.xlu0 %v1048, 127
    %v1078 = vpop.permute.xlu0 %1077
    %1079 = vrot.lane.b32.xlu0 %v1049, 127
    %v1080 = vpop.permute.xlu0 %1079
    %1081 = vrot.lane.b32.xlu0 %v1050, 127
    %v1082 = vpop.permute.xlu0 %1081
    %1083 = vrot.lane.b32.xlu0 %v1051, 127
    %v1084 = vpop.permute.xlu0 %1083
    %1085 = vrot.lane.b32.xlu0 %v1052, 127
    %v1086 = vpop.permute.xlu0 %1085
    %1087 = vrot.lane.b32.xlu0 %v1053, 127
    %v1088 = vpop.permute.xlu0 %1087
    %1089 = vrot.lane.b32.xlu0 %v1054, 127
    %v1090 = vpop.permute.xlu0 %1089
    %vm1091 = vcmask 1039360
    %v1092 = vsel %vm1091, %v1068, %v1070
    %v1093 = vsel %vm1091, %v1072, %v1074
    %v1094 = vsel %vm1091, %v1076, %v1078
    %v1095 = vsel %vm1091, %v1080, %v1082
    %v1096 = vsel %vm1091, %v1084, %v1086
    %v1097 = vsel %vm1091, %v1088, %v1090
    %v1110 = vmax.f32 %v1043, %v1092
    %v1111 = vmax.f32 %v1044, %v1070
    %v1112 = vmax.f32 %v1045, %v1093
    %v1113 = vmax.f32 %v1046, %v1074
    %v1114 = vmax.f32 %v1047, %v1094
    %v1115 = vmax.f32 %v1048, %v1078
    %v1116 = vmax.f32 %v1049, %v1095
    %v1117 = vmax.f32 %v1050, %v1082
    %v1118 = vmax.f32 %v1051, %v1096
    %v1119 = vmax.f32 %v1052, %v1086
    %v1120 = vmax.f32 %v1053, %v1097
    %v1121 = vmax.f32 %v1054, %v1090
    %vm1122 = vcmp.ge.f32.partialorder %v1110, 0.0
    %vm1123 = vcmp.ge.f32.partialorder %v1111, 0.0
    %vm1124 = vcmp.ge.f32.partialorder %v1112, 0.0
    %vm1125 = vcmp.ge.f32.partialorder %v1113, 0.0
    %vm1126 = vcmp.ge.f32.partialorder %v1114, 0.0
    %vm1127 = vcmp.ge.f32.partialorder %v1115, 0.0
    %vm1128 = vcmp.ge.f32.partialorder %v1116, 0.0
    %vm1129 = vcmp.ge.f32.partialorder %v1117, 0.0
    %vm1130 = vcmp.ge.f32.partialorder %v1118, 0.0
    %vm1131 = vcmp.ge.f32.partialorder %v1119, 0.0
    %vm1132 = vcmp.ge.f32.partialorder %v1120, 0.0
    %vm1133 = vcmp.ge.f32.partialorder %v1121, 0.0
    %v1134 = vmul.f32 %v1110, 0.01
    %v1135 = vmul.f32 %v1111, 0.01
    %v1136 = vmul.f32 %v1112, 0.01
    %v1137 = vmul.f32 %v1113, 0.01
    %v1138 = vmul.f32 %v1114, 0.01
    %v1139 = vmul.f32 %v1115, 0.01
    %v1140 = vmul.f32 %v1116, 0.01
    %v1141 = vmul.f32 %v1117, 0.01
    %v1142 = vmul.f32 %v1118, 0.01
    %v1143 = vmul.f32 %v1119, 0.01
    %v1144 = vmul.f32 %v1120, 0.01
    %v1145 = vmul.f32 %v1121, 0.01
    %v1146 = vsel %vm1122, %v1110, %v1134
    %v1147 = vsel %vm1123, %v1111, %v1135
    %v1148 = vsel %vm1124, %v1112, %v1136
    %v1149 = vsel %vm1125, %v1113, %v1137
    %v1150 = vsel %vm1126, %v1114, %v1138
    %v1151 = vsel %vm1127, %v1115, %v1139
    %v1152 = vsel %vm1128, %v1116, %v1140
    %v1153 = vsel %vm1129, %v1117, %v1141
    %v1154 = vsel %vm1130, %v1118, %v1142
    %v1155 = vsel %vm1131, %v1119, %v1143
    %v1156 = vsel %vm1132, %v1120, %v1144
    %v1157 = vsel %vm1133, %v1121, %v1145
    %v1158 = vld [vmem:[%s3] sm:$0xff]
    %v1159 = vld [vmem:[%s3 + $0x8] sm:$0xff]
    %v1160 = vld [vmem:[%s3 + $0x10] sm:$0xff]
    %v1161 = vld [vmem:[%s3 + $0x18] sm:$0xff]
    %v1162 = vld [vmem:[%s3 + $0x20] sm:$0xff]
    %v1163 = vld [vmem:[%s3 + $0x28] sm:$0xff]
    %v1164 = vld [vmem:[%s3 + $0x30] sm:$0xff]
    %v1165 = vld [vmem:[%s3 + $0x38] sm:$0xff]
    %v1166 = vld [vmem:[%s3 + $0x40] sm:$0xff]
    %v1167 = vld [vmem:[%s3 + $0x48] sm:$0xff]
    %v1168 = vld [vmem:[%s3 + $0x50] sm:$0xff]
    %v1169 = vld [vmem:[%s3 + $0x58] sm:$0xff]
    %v1170 = vld [vmem:[%s3 + $0x60] sm:$0xff]
    %v1171 = vld [vmem:[%s3 + $0x68] sm:$0xff]
    %v1172 = vld [vmem:[%s3 + $0x70] sm:$0xff]
    %v1173 = vld [vmem:[%s3 + $0x78] sm:$0xff]
    %v1174 = vld [vmem:[%s3 + $0x80] sm:$0xff]
    %v1175 = vld [vmem:[%s3 + $0x88] sm:$0x7f]
    %vm1188 = vcmask 1045504
    %v1189 = vrot.slane %v1146, 2
    %v1190 = vrot.slane %v1148, 2
    %v1191 = vsel %vm1188, %v1189, %v1190
    %v1192 = vrot.slane %v1147, 2
    %v1193 = vrot.slane %v1149, 2
    %v1194 = vsel %vm1188, %v1192, %v1193
    %v1195 = vrot.slane %v1150, 2
    %v1196 = vsel %vm1188, %v1190, %v1195
    %v1197 = vrot.slane %v1151, 2
    %v1198 = vsel %vm1188, %v1193, %v1197
    %v1199 = vrot.slane %v1152, 2
    %v1200 = vrot.slane %v1154, 2
    %v1201 = vsel %vm1188, %v1199, %v1200
    %v1202 = vrot.slane %v1153, 2
    %v1203 = vrot.slane %v1155, 2
    %v1204 = vsel %vm1188, %v1202, %v1203
    %v1205 = vrot.slane %v1156, 2
    %v1206 = vsel %vm1188, %v1200, %v1205
    %v1207 = vrot.slane %v1157, 2
    %v1208 = vsel %vm1188, %v1203, %v1207
    %s1213 = scalar_lea.vmem %s3, 144
    %v1214 = vld [vmem:[%s1213] sm:$0xff]
    %v1215 = vld [vmem:[%s1213 + $0x8] sm:$0xff]
    %v1216 = vld [vmem:[%s1213 + $0x10] sm:$0xff]
    %v1217 = vld [vmem:[%s1213 + $0x18] sm:$0xff]
    %v1218 = vld [vmem:[%s1213 + $0x20] sm:$0xff]
    %v1219 = vld [vmem:[%s1213 + $0x28] sm:$0xff]
    %v1220 = vld [vmem:[%s1213 + $0x30] sm:$0xff]
    %v1221 = vld [vmem:[%s1213 + $0x38] sm:$0xff]
    %v1222 = vld [vmem:[%s1213 + $0x40] sm:$0xff]
    %v1223 = vld [vmem:[%s1213 + $0x48] sm:$0xff]
    %v1224 = vld [vmem:[%s1213 + $0x50] sm:$0xff]
    %v1225 = vld [vmem:[%s1213 + $0x58] sm:$0xff]
    %v1226 = vld [vmem:[%s1213 + $0x60] sm:$0xff]
    %v1227 = vld [vmem:[%s1213 + $0x68] sm:$0xff]
    %v1228 = vld [vmem:[%s1213 + $0x70] sm:$0xff]
    %v1229 = vld [vmem:[%s1213 + $0x78] sm:$0xff]
    %v1230 = vld [vmem:[%s1213 + $0x80] sm:$0xff]
    %v1231 = vld [vmem:[%s1213 + $0x88] sm:$0x7f]
    %vm1232 = vcmask 121856
    %v1233 = vsel %vm1232, %v1194, 0
    %v1235 = vsel %vm1232, %v1198, 0
    %v1237 = vsel %vm1232, %v1204, 0
    %v1239 = vsel %vm1232, %v1208, 0
    %v1242 = vsel %vm1002, %v1231, 0
    %1244 = vmatprep.subr.mxu0 0.0
    %1245 = vmatpush1.msra.mxu0 %v1229
    %1246 = vmatprep.subr.mxu0 0.0
    %1247 = vmatpush1.msra.mxu0 %v1228
    %1248 = vmatprep.subr.mxu0 0.0
    %1249 = vmatpush1.msra.mxu0 %v1227
    %1250 = vmatprep.subr.mxu0 0.0
    %1251 = vmatpush1.msra.mxu0 %v1226
    %1252 = vmatprep.subr.mxu0 0.0
    %1253 = vmatpush1.msra.mxu0 %v1225
    %1254 = vmatprep.subr.mxu0 0.0
    %1255 = vmatpush1.msra.mxu0 %v1224
    %1256 = vmatprep.subr.mxu0 0.0
    %1257 = vmatpush1.msra.mxu0 %v1223
    %1258 = vmatprep.subr.mxu0 0.0
    %1259 = vmatpush1.msra.mxu0 %v1222
    %1260 = vmatprep.subr.mxu0 0.0
    %1261 = vmatpush1.msra.mxu0 %v1221
    %1262 = vmatprep.subr.mxu0 0.0
    %1263 = vmatpush1.msra.mxu0 %v1220
    %1264 = vmatprep.subr.mxu0 0.0
    %1265 = vmatpush1.msra.mxu0 %v1219
    %1266 = vmatprep.subr.mxu0 0.0
    %1267 = vmatpush1.msra.mxu0 %v1218
    %1268 = vmatprep.subr.mxu0 0.0
    %1269 = vmatpush1.msra.mxu0 %v1217
    %1270 = vmatprep.subr.mxu0 0.0
    %1271 = vmatpush1.msra.mxu0 %v1216
    %1272 = vmatprep.subr.mxu0 0.0
    %1273 = vmatpush1.msra.mxu0 %v1215
    %1274 = vmatprep.subr.mxu0 0.0
    %1275 = vmatpush1.msra.mxu0 %v1214
    %1276 = vmatprep.subr.mxu0 0.0
    %1277 = vmatpush2.msra.mxu0 0.0
    %1278 = vmatprep.subr.mxu0 0.0
    %1279 = vmatpush2.msra.mxu0 0.0
    %1280 = vmatprep.subr.mxu0 0.0
    %1281 = vmatpush2.msra.mxu0 0.0
    %1282 = vmatprep.subr.mxu0 0.0
    %1283 = vmatpush2.msra.mxu0 0.0
    %1284 = vmatprep.subr.mxu0 0.0
    %1285 = vmatpush2.msra.mxu0 0.0
    %1286 = vmatprep.subr.mxu0 0.0
    %1287 = vmatpush2.msra.mxu0 0.0
    %1288 = vmatprep.subr.mxu0 0.0
    %1289 = vmatpush2.msra.mxu0 0.0
    %1290 = vmatprep.subr.mxu0 0.0
    %1291 = vmatpush2.msra.mxu0 0.0
    %1292 = vmatprep.subr.mxu0 0.0
    %1293 = vmatpush2.msra.mxu0 0.0
    %1294 = vmatprep.subr.mxu0 0.0
    %1295 = vmatpush2.msra.mxu0 0.0
    %1296 = vmatprep.subr.mxu0 0.0
    %1297 = vmatpush2.msra.mxu0 0.0
    %1298 = vmatprep.subr.mxu0 0.0
    %1299 = vmatpush2.msra.mxu0 0.0
    %1300 = vmatprep.subr.mxu0 0.0
    %1301 = vmatpush2.msra.mxu0 0.0
    %1302 = vmatprep.subr.mxu0 0.0
    %1303 = vmatpush2.msra.mxu0 0.0
    %1304 = vmatprep.subr.mxu0 0.0
    %1305 = vmatpush2.msra.mxu0 %v1242
    %1306 = vmatprep.subr.mxu0 0.0
    %1307 = vmatpush2.msra.mxu0 %v1230
    %1308 = vmatprep.mubr.f32.mxu0 %v1233
    %1309 = vmatmul.mubr.f32.gmra.mxu0 %v1191
    %v1310 = vpop.f32.mrf.mxu0
    %v1311 = vadd.f32 0.0, %v1310
    %v1312 = vpop.f32.mrf.mxu0
    %1313 = vmatprep.mubr.f32.mxu0 %v1235
    %1314 = vmatmul.mubr.f32.gmra.mxu0 %v1196
    %v1315 = vpop.f32.mrf.mxu0
    %v1316 = vadd.f32 0.0, %v1315
    %v1317 = vpop.f32.mrf.mxu0
    %1318 = vmatprep.mubr.f32.mxu0 %v1237
    %1319 = vmatmul.mubr.f32.gmra.mxu0 %v1201
    %v1320 = vpop.f32.mrf.mxu0
    %v1321 = vadd.f32 0.0, %v1320
    %v1322 = vpop.f32.mrf.mxu0
    %1323 = vmatprep.mubr.f32.mxu0 %v1239
    %1324 = vmatmul.mubr.f32.gmra.mxu0 %v1206
    %v1325 = vpop.f32.mrf.mxu0
    %v1326 = vadd.f32 0.0, %v1325
    %v1327 = vpop.f32.mrf.mxu0
    %1328 = vdwg.mxu0
    %v1329 = vsel %vm1232, %v1147, 0
    %v1331 = vsel %vm1232, %v1149, 0
    %v1333 = vsel %vm1232, %v1153, 0
    %v1335 = vsel %vm1232, %v1155, 0
    %v1338 = vsel %vm1002, %v1175, 0
    %1340 = vmatprep.subr.mxu0 0.0
    %1341 = vmatpush1.msra.mxu0 %v1173
    %1342 = vmatprep.subr.mxu0 0.0
    %1343 = vmatpush1.msra.mxu0 %v1172
    %1344 = vmatprep.subr.mxu0 0.0
    %1345 = vmatpush1.msra.mxu0 %v1171
    %1346 = vmatprep.subr.mxu0 0.0
    %1347 = vmatpush1.msra.mxu0 %v1170
    %1348 = vmatprep.subr.mxu0 0.0
    %1349 = vmatpush1.msra.mxu0 %v1169
    %1350 = vmatprep.subr.mxu0 0.0
    %1351 = vmatpush1.msra.mxu0 %v1168
    %1352 = vmatprep.subr.mxu0 0.0
    %1353 = vmatpush1.msra.mxu0 %v1167
    %1354 = vmatprep.subr.mxu0 0.0
    %1355 = vmatpush1.msra.mxu0 %v1166
    %1356 = vmatprep.subr.mxu0 0.0
    %1357 = vmatpush1.msra.mxu0 %v1165
    %1358 = vmatprep.subr.mxu0 0.0
    %1359 = vmatpush1.msra.mxu0 %v1164
    %1360 = vmatprep.subr.mxu0 0.0
    %1361 = vmatpush1.msra.mxu0 %v1163
    %1362 = vmatprep.subr.mxu0 0.0
    %1363 = vmatpush1.msra.mxu0 %v1162
    %1364 = vmatprep.subr.mxu0 0.0
    %1365 = vmatpush1.msra.mxu0 %v1161
    %1366 = vmatprep.subr.mxu0 0.0
    %1367 = vmatpush1.msra.mxu0 %v1160
    %1368 = vmatprep.subr.mxu0 0.0
    %1369 = vmatpush1.msra.mxu0 %v1159
    %1370 = vmatprep.subr.mxu0 0.0
    %1371 = vmatpush1.msra.mxu0 %v1158
    %1372 = vmatprep.subr.mxu0 0.0
    %1373 = vmatpush2.msra.mxu0 0.0
    %1374 = vmatprep.subr.mxu0 0.0
    %1375 = vmatpush2.msra.mxu0 0.0
    %1376 = vmatprep.subr.mxu0 0.0
    %1377 = vmatpush2.msra.mxu0 0.0
    %1378 = vmatprep.subr.mxu0 0.0
    %1379 = vmatpush2.msra.mxu0 0.0
    %1380 = vmatprep.subr.mxu0 0.0
    %1381 = vmatpush2.msra.mxu0 0.0
    %1382 = vmatprep.subr.mxu0 0.0
    %1383 = vmatpush2.msra.mxu0 0.0
    %1384 = vmatprep.subr.mxu0 0.0
    %1385 = vmatpush2.msra.mxu0 0.0
    %1386 = vmatprep.subr.mxu0 0.0
    %1387 = vmatpush2.msra.mxu0 0.0
    %1388 = vmatprep.subr.mxu0 0.0
    %1389 = vmatpush2.msra.mxu0 0.0
    %1390 = vmatprep.subr.mxu0 0.0
    %1391 = vmatpush2.msra.mxu0 0.0
    %1392 = vmatprep.subr.mxu0 0.0
    %1393 = vmatpush2.msra.mxu0 0.0
    %1394 = vmatprep.subr.mxu0 0.0
    %1395 = vmatpush2.msra.mxu0 0.0
    %1396 = vmatprep.subr.mxu0 0.0
    %1397 = vmatpush2.msra.mxu0 0.0
    %1398 = vmatprep.subr.mxu0 0.0
    %1399 = vmatpush2.msra.mxu0 0.0
    %1400 = vmatprep.subr.mxu0 0.0
    %1401 = vmatpush2.msra.mxu0 %v1338
    %1402 = vmatprep.subr.mxu0 0.0
    %1403 = vmatpush2.msra.mxu0 %v1174
    %1404 = vmatprep.mubr.f32.mxu0 %v1329
    %1405 = vmatmul.mubr.f32.gmra.mxu0 %v1146
    %v1406 = vpop.f32.mrf.mxu0
    %v1407 = vadd.f32 %v1311, %v1406
    %v1408 = vpop.f32.mrf.mxu0
    %1409 = vmatprep.mubr.f32.mxu0 %v1331
    %1410 = vmatmul.mubr.f32.gmra.mxu0 %v1148
    %v1411 = vpop.f32.mrf.mxu0
    %v1412 = vadd.f32 %v1316, %v1411
    %v1413 = vpop.f32.mrf.mxu0
    %1414 = vmatprep.mubr.f32.mxu0 %v1333
    %1415 = vmatmul.mubr.f32.gmra.mxu0 %v1152
    %v1416 = vpop.f32.mrf.mxu0
    %v1417 = vadd.f32 %v1321, %v1416
    %v1418 = vpop.f32.mrf.mxu0
    %1419 = vmatprep.mubr.f32.mxu0 %v1335
    %1420 = vmatmul.mubr.f32.gmra.mxu0 %v1154
    %v1421 = vpop.f32.mrf.mxu0
    %v1422 = vadd.f32 %v1326, %v1421
    %v1423 = vpop.f32.mrf.mxu0
    %1424 = vdwg.mxu0
    %v1425 = vrot.slane %v1146, 4
    %v1426 = vrot.slane %v1148, 4
    %v1427 = vsel %vm125, %v1425, %v1426
    %v1428 = vrot.slane %v1147, 4
    %v1429 = vrot.slane %v1149, 4
    %v1430 = vsel %vm125, %v1428, %v1429
    %v1431 = vrot.slane %v1150, 4
    %v1432 = vsel %vm125, %v1426, %v1431
    %v1433 = vrot.slane %v1151, 4
    %v1434 = vsel %vm125, %v1429, %v1433
    %v1435 = vrot.slane %v1152, 4
    %v1436 = vrot.slane %v1154, 4
    %v1437 = vsel %vm125, %v1435, %v1436
    %v1438 = vrot.slane %v1153, 4
    %v1439 = vrot.slane %v1155, 4
    %v1440 = vsel %vm125, %v1438, %v1439
    %v1441 = vrot.slane %v1156, 4
    %v1442 = vsel %vm125, %v1436, %v1441
    %v1443 = vrot.slane %v1157, 4
    %v1444 = vsel %vm125, %v1439, %v1443
    %s1449 = scalar_lea.vmem %s3, 288
    %v1450 = vld [vmem:[%s1449] sm:$0xff]
    %v1451 = vld [vmem:[%s1449 + $0x8] sm:$0xff]
    %v1452 = vld [vmem:[%s1449 + $0x10] sm:$0xff]
    %v1453 = vld [vmem:[%s1449 + $0x18] sm:$0xff]
    %v1454 = vld [vmem:[%s1449 + $0x20] sm:$0xff]
    %v1455 = vld [vmem:[%s1449 + $0x28] sm:$0xff]
    %v1456 = vld [vmem:[%s1449 + $0x30] sm:$0xff]
    %v1457 = vld [vmem:[%s1449 + $0x38] sm:$0xff]
    %v1458 = vld [vmem:[%s1449 + $0x40] sm:$0xff]
    %v1459 = vld [vmem:[%s1449 + $0x48] sm:$0xff]
    %v1460 = vld [vmem:[%s1449 + $0x50] sm:$0xff]
    %v1461 = vld [vmem:[%s1449 + $0x58] sm:$0xff]
    %v1462 = vld [vmem:[%s1449 + $0x60] sm:$0xff]
    %v1463 = vld [vmem:[%s1449 + $0x68] sm:$0xff]
    %v1464 = vld [vmem:[%s1449 + $0x70] sm:$0xff]
    %v1465 = vld [vmem:[%s1449 + $0x78] sm:$0xff]
    %v1466 = vld [vmem:[%s1449 + $0x80] sm:$0xff]
    %v1467 = vld [vmem:[%s1449 + $0x88] sm:$0x7f]
    %v1468 = vsel %vm1232, %v1430, 0
    %v1470 = vsel %vm1232, %v1434, 0
    %v1472 = vsel %vm1232, %v1440, 0
    %v1474 = vsel %vm1232, %v1444, 0
    %v1477 = vsel %vm1002, %v1467, 0
    %1479 = vmatprep.subr.mxu0 0.0
    %1480 = vmatpush1.msra.mxu0 %v1465
    %1481 = vmatprep.subr.mxu0 0.0
    %1482 = vmatpush1.msra.mxu0 %v1464
    %1483 = vmatprep.subr.mxu0 0.0
    %1484 = vmatpush1.msra.mxu0 %v1463
    %1485 = vmatprep.subr.mxu0 0.0
    %1486 = vmatpush1.msra.mxu0 %v1462
    %1487 = vmatprep.subr.mxu0 0.0
    %1488 = vmatpush1.msra.mxu0 %v1461
    %1489 = vmatprep.subr.mxu0 0.0
    %1490 = vmatpush1.msra.mxu0 %v1460
    %1491 = vmatprep.subr.mxu0 0.0
    %1492 = vmatpush1.msra.mxu0 %v1459
    %1493 = vmatprep.subr.mxu0 0.0
    %1494 = vmatpush1.msra.mxu0 %v1458
    %1495 = vmatprep.subr.mxu0 0.0
    %1496 = vmatpush1.msra.mxu0 %v1457
    %1497 = vmatprep.subr.mxu0 0.0
    %1498 = vmatpush1.msra.mxu0 %v1456
    %1499 = vmatprep.subr.mxu0 0.0
    %1500 = vmatpush1.msra.mxu0 %v1455
    %1501 = vmatprep.subr.mxu0 0.0
    %1502 = vmatpush1.msra.mxu0 %v1454
    %1503 = vmatprep.subr.mxu0 0.0
    %1504 = vmatpush1.msra.mxu0 %v1453
    %1505 = vmatprep.subr.mxu0 0.0
    %1506 = vmatpush1.msra.mxu0 %v1452
    %1507 = vmatprep.subr.mxu0 0.0
    %1508 = vmatpush1.msra.mxu0 %v1451
    %1509 = vmatprep.subr.mxu0 0.0
    %1510 = vmatpush1.msra.mxu0 %v1450
    %1511 = vmatprep.subr.mxu0 0.0
    %1512 = vmatpush2.msra.mxu0 0.0
    %1513 = vmatprep.subr.mxu0 0.0
    %1514 = vmatpush2.msra.mxu0 0.0
    %1515 = vmatprep.subr.mxu0 0.0
    %1516 = vmatpush2.msra.mxu0 0.0
    %1517 = vmatprep.subr.mxu0 0.0
    %1518 = vmatpush2.msra.mxu0 0.0
    %1519 = vmatprep.subr.mxu0 0.0
    %1520 = vmatpush2.msra.mxu0 0.0
    %1521 = vmatprep.subr.mxu0 0.0
    %1522 = vmatpush2.msra.mxu0 0.0
    %1523 = vmatprep.subr.mxu0 0.0
    %1524 = vmatpush2.msra.mxu0 0.0
    %1525 = vmatprep.subr.mxu0 0.0
    %1526 = vmatpush2.msra.mxu0 0.0
    %1527 = vmatprep.subr.mxu0 0.0
    %1528 = vmatpush2.msra.mxu0 0.0
    %1529 = vmatprep.subr.mxu0 0.0
    %1530 = vmatpush2.msra.mxu0 0.0
    %1531 = vmatprep.subr.mxu0 0.0
    %1532 = vmatpush2.msra.mxu0 0.0
    %1533 = vmatprep.subr.mxu0 0.0
    %1534 = vmatpush2.msra.mxu0 0.0
    %1535 = vmatprep.subr.mxu0 0.0
    %1536 = vmatpush2.msra.mxu0 0.0
    %1537 = vmatprep.subr.mxu0 0.0
    %1538 = vmatpush2.msra.mxu0 0.0
    %1539 = vmatprep.subr.mxu0 0.0
    %1540 = vmatpush2.msra.mxu0 %v1477
    %1541 = vmatprep.subr.mxu0 0.0
    %1542 = vmatpush2.msra.mxu0 %v1466
    %1543 = vmatprep.mubr.f32.mxu0 %v1468
    %1544 = vmatmul.mubr.f32.gmra.mxu0 %v1427
    %v1545 = vpop.f32.mrf.mxu0
    %v1546 = vadd.f32 0.0, %v1545
    %v1547 = vpop.f32.mrf.mxu0
    %1548 = vmatprep.mubr.f32.mxu0 %v1470
    %1549 = vmatmul.mubr.f32.gmra.mxu0 %v1432
    %v1550 = vpop.f32.mrf.mxu0
    %v1551 = vadd.f32 0.0, %v1550
    %v1552 = vpop.f32.mrf.mxu0
    %1553 = vmatprep.mubr.f32.mxu0 %v1472
    %1554 = vmatmul.mubr.f32.gmra.mxu0 %v1437
    %v1555 = vpop.f32.mrf.mxu0
    %v1556 = vadd.f32 0.0, %v1555
    %v1557 = vpop.f32.mrf.mxu0
    %1558 = vmatprep.mubr.f32.mxu0 %v1474
    %1559 = vmatmul.mubr.f32.gmra.mxu0 %v1442
    %v1560 = vpop.f32.mrf.mxu0
    %v1561 = vadd.f32 0.0, %v1560
    %v1562 = vpop.f32.mrf.mxu0
    %1563 = vdwg.mxu0
    %v1564 = vadd.f32 %v1407, %v1546
    %v1565 = vadd.f32 %v1412, %v1551
    %v1566 = vadd.f32 %v1417, %v1556
    %v1567 = vadd.f32 %v1422, %v1561
    %vm1568 = vcmask 1041408
    %v1569 = vrot.slane %v1146, 6
    %v1570 = vrot.slane %v1148, 6
    %v1571 = vsel %vm1568, %v1569, %v1570
    %v1572 = vrot.slane %v1147, 6
    %v1573 = vrot.slane %v1149, 6
    %v1574 = vsel %vm1568, %v1572, %v1573
    %v1575 = vrot.slane %v1150, 6
    %v1576 = vsel %vm1568, %v1570, %v1575
    %v1577 = vrot.slane %v1151, 6
    %v1578 = vsel %vm1568, %v1573, %v1577
    %v1579 = vrot.slane %v1152, 6
    %v1580 = vrot.slane %v1154, 6
    %v1581 = vsel %vm1568, %v1579, %v1580
    %v1582 = vrot.slane %v1153, 6
    %v1583 = vrot.slane %v1155, 6
    %v1584 = vsel %vm1568, %v1582, %v1583
    %v1585 = vrot.slane %v1156, 6
    %v1586 = vsel %vm1568, %v1580, %v1585
    %v1587 = vrot.slane %v1157, 6
    %v1588 = vsel %vm1568, %v1583, %v1587
    %s1593 = scalar_lea.vmem %s3, 432
    %v1594 = vld [vmem:[%s1593] sm:$0xff]
    %v1595 = vld [vmem:[%s1593 + $0x8] sm:$0xff]
    %v1596 = vld [vmem:[%s1593 + $0x10] sm:$0xff]
    %v1597 = vld [vmem:[%s1593 + $0x18] sm:$0xff]
    %v1598 = vld [vmem:[%s1593 + $0x20] sm:$0xff]
    %v1599 = vld [vmem:[%s1593 + $0x28] sm:$0xff]
    %v1600 = vld [vmem:[%s1593 + $0x30] sm:$0xff]
    %v1601 = vld [vmem:[%s1593 + $0x38] sm:$0xff]
    %v1602 = vld [vmem:[%s1593 + $0x40] sm:$0xff]
    %v1603 = vld [vmem:[%s1593 + $0x48] sm:$0xff]
    %v1604 = vld [vmem:[%s1593 + $0x50] sm:$0xff]
    %v1605 = vld [vmem:[%s1593 + $0x58] sm:$0xff]
    %v1606 = vld [vmem:[%s1593 + $0x60] sm:$0xff]
    %v1607 = vld [vmem:[%s1593 + $0x68] sm:$0xff]
    %v1608 = vld [vmem:[%s1593 + $0x70] sm:$0xff]
    %v1609 = vld [vmem:[%s1593 + $0x78] sm:$0xff]
    %v1610 = vld [vmem:[%s1593 + $0x80] sm:$0xff]
    %v1611 = vld [vmem:[%s1593 + $0x88] sm:$0x7f]
    %v1612 = vsel %vm1232, %v1574, 0
    %v1614 = vsel %vm1232, %v1578, 0
    %v1616 = vsel %vm1232, %v1584, 0
    %v1618 = vsel %vm1232, %v1588, 0
    %v1621 = vsel %vm1002, %v1611, 0
    %1623 = vmatprep.subr.mxu0 0.0
    %1624 = vmatpush1.msra.mxu0 %v1609
    %1625 = vmatprep.subr.mxu0 0.0
    %1626 = vmatpush1.msra.mxu0 %v1608
    %1627 = vmatprep.subr.mxu0 0.0
    %1628 = vmatpush1.msra.mxu0 %v1607
    %1629 = vmatprep.subr.mxu0 0.0
    %1630 = vmatpush1.msra.mxu0 %v1606
    %1631 = vmatprep.subr.mxu0 0.0
    %1632 = vmatpush1.msra.mxu0 %v1605
    %1633 = vmatprep.subr.mxu0 0.0
    %1634 = vmatpush1.msra.mxu0 %v1604
    %1635 = vmatprep.subr.mxu0 0.0
    %1636 = vmatpush1.msra.mxu0 %v1603
    %1637 = vmatprep.subr.mxu0 0.0
    %1638 = vmatpush1.msra.mxu0 %v1602
    %1639 = vmatprep.subr.mxu0 0.0
    %1640 = vmatpush1.msra.mxu0 %v1601
    %1641 = vmatprep.subr.mxu0 0.0
    %1642 = vmatpush1.msra.mxu0 %v1600
    %1643 = vmatprep.subr.mxu0 0.0
    %1644 = vmatpush1.msra.mxu0 %v1599
    %1645 = vmatprep.subr.mxu0 0.0
    %1646 = vmatpush1.msra.mxu0 %v1598
    %1647 = vmatprep.subr.mxu0 0.0
    %1648 = vmatpush1.msra.mxu0 %v1597
    %1649 = vmatprep.subr.mxu0 0.0
    %1650 = vmatpush1.msra.mxu0 %v1596
    %1651 = vmatprep.subr.mxu0 0.0
    %1652 = vmatpush1.msra.mxu0 %v1595
    %1653 = vmatprep.subr.mxu0 0.0
    %1654 = vmatpush1.msra.mxu0 %v1594
    %1655 = vmatprep.subr.mxu0 0.0
    %1656 = vmatpush2.msra.mxu0 0.0
    %1657 = vmatprep.subr.mxu0 0.0
    %1658 = vmatpush2.msra.mxu0 0.0
    %1659 = vmatprep.subr.mxu0 0.0
    %1660 = vmatpush2.msra.mxu0 0.0
    %1661 = vmatprep.subr.mxu0 0.0
    %1662 = vmatpush2.msra.mxu0 0.0
    %1663 = vmatprep.subr.mxu0 0.0
    %1664 = vmatpush2.msra.mxu0 0.0
    %1665 = vmatprep.subr.mxu0 0.0
    %1666 = vmatpush2.msra.mxu0 0.0
    %1667 = vmatprep.subr.mxu0 0.0
    %1668 = vmatpush2.msra.mxu0 0.0
    %1669 = vmatprep.subr.mxu0 0.0
    %1670 = vmatpush2.msra.mxu0 0.0
    %1671 = vmatprep.subr.mxu0 0.0
    %1672 = vmatpush2.msra.mxu0 0.0
    %1673 = vmatprep.subr.mxu0 0.0
    %1674 = vmatpush2.msra.mxu0 0.0
    %1675 = vmatprep.subr.mxu0 0.0
    %1676 = vmatpush2.msra.mxu0 0.0
    %1677 = vmatprep.subr.mxu0 0.0
    %1678 = vmatpush2.msra.mxu0 0.0
    %1679 = vmatprep.subr.mxu0 0.0
    %1680 = vmatpush2.msra.mxu0 0.0
    %1681 = vmatprep.subr.mxu0 0.0
    %1682 = vmatpush2.msra.mxu0 0.0
    %1683 = vmatprep.subr.mxu0 0.0
    %1684 = vmatpush2.msra.mxu0 %v1621
    %1685 = vmatprep.subr.mxu0 0.0
    %1686 = vmatpush2.msra.mxu0 %v1610
    %1687 = vmatprep.mubr.f32.mxu0 %v1612
    %1688 = vmatmul.mubr.f32.gmra.mxu0 %v1571
    %v1689 = vpop.f32.mrf.mxu0
    %v1690 = vadd.f32 0.0, %v1689
    %v1691 = vpop.f32.mrf.mxu0
    %1692 = vmatprep.mubr.f32.mxu0 %v1614
    %1693 = vmatmul.mubr.f32.gmra.mxu0 %v1576
    %v1694 = vpop.f32.mrf.mxu0
    %v1695 = vadd.f32 0.0, %v1694
    %v1696 = vpop.f32.mrf.mxu0
    %1697 = vmatprep.mubr.f32.mxu0 %v1616
    %1698 = vmatmul.mubr.f32.gmra.mxu0 %v1581
    %v1699 = vpop.f32.mrf.mxu0
    %v1700 = vadd.f32 0.0, %v1699
    %v1701 = vpop.f32.mrf.mxu0
    %1702 = vmatprep.mubr.f32.mxu0 %v1618
    %1703 = vmatmul.mubr.f32.gmra.mxu0 %v1586
    %v1704 = vpop.f32.mrf.mxu0
    %v1705 = vadd.f32 0.0, %v1704
    %v1706 = vpop.f32.mrf.mxu0
    %1707 = vdwg.mxu0
    %v1708 = vadd.f32 %v1564, %v1690
    %v1709 = vadd.f32 %v1565, %v1695
    %v1710 = vadd.f32 %v1566, %v1700
    %v1711 = vadd.f32 %v1567, %v1705
    %s1712 = scalar_lea.vmem %s3, 576
    %v1713 = vld [vmem:[%s1712] sm:$0xff]
    %v1714 = vld [vmem:[%s1712 + $0x8] sm:$0xff]
    %v1715 = vld [vmem:[%s1712 + $0x10] sm:$0xff]
    %v1716 = vld [vmem:[%s1712 + $0x18] sm:$0xff]
    %v1717 = vld [vmem:[%s1712 + $0x20] sm:$0xff]
    %v1718 = vld [vmem:[%s1712 + $0x28] sm:$0xff]
    %v1719 = vld [vmem:[%s1712 + $0x30] sm:$0xff]
    %v1720 = vld [vmem:[%s1712 + $0x38] sm:$0xff]
    %v1721 = vld [vmem:[%s1712 + $0x40] sm:$0xff]
    %v1722 = vld [vmem:[%s1712 + $0x48] sm:$0xff]
    %v1723 = vld [vmem:[%s1712 + $0x50] sm:$0xff]
    %v1724 = vld [vmem:[%s1712 + $0x58] sm:$0xff]
    %v1725 = vld [vmem:[%s1712 + $0x60] sm:$0xff]
    %v1726 = vld [vmem:[%s1712 + $0x68] sm:$0xff]
    %v1727 = vld [vmem:[%s1712 + $0x70] sm:$0xff]
    %v1728 = vld [vmem:[%s1712 + $0x78] sm:$0xff]
    %v1729 = vld [vmem:[%s1712 + $0x80] sm:$0xff]
    %v1730 = vld [vmem:[%s1712 + $0x88] sm:$0x7f]
    %v1731 = vsel %vm1232, %v1151, 0
    %v1733 = vsel %vm1232, %v1157, 0
    %v1736 = vsel %vm1002, %v1730, 0
    %1738 = vmatprep.subr.mxu0 0.0
    %1739 = vmatpush1.msra.mxu0 %v1728
    %1740 = vmatprep.subr.mxu0 0.0
    %1741 = vmatpush1.msra.mxu0 %v1727
    %1742 = vmatprep.subr.mxu0 0.0
    %1743 = vmatpush1.msra.mxu0 %v1726
    %1744 = vmatprep.subr.mxu0 0.0
    %1745 = vmatpush1.msra.mxu0 %v1725
    %1746 = vmatprep.subr.mxu0 0.0
    %1747 = vmatpush1.msra.mxu0 %v1724
    %1748 = vmatprep.subr.mxu0 0.0
    %1749 = vmatpush1.msra.mxu0 %v1723
    %1750 = vmatprep.subr.mxu0 0.0
    %1751 = vmatpush1.msra.mxu0 %v1722
    %1752 = vmatprep.subr.mxu0 0.0
    %1753 = vmatpush1.msra.mxu0 %v1721
    %1754 = vmatprep.subr.mxu0 0.0
    %1755 = vmatpush1.msra.mxu0 %v1720
    %1756 = vmatprep.subr.mxu0 0.0
    %1757 = vmatpush1.msra.mxu0 %v1719
    %1758 = vmatprep.subr.mxu0 0.0
    %1759 = vmatpush1.msra.mxu0 %v1718
    %1760 = vmatprep.subr.mxu0 0.0
    %1761 = vmatpush1.msra.mxu0 %v1717
    %1762 = vmatprep.subr.mxu0 0.0
    %1763 = vmatpush1.msra.mxu0 %v1716
    %1764 = vmatprep.subr.mxu0 0.0
    %1765 = vmatpush1.msra.mxu0 %v1715
    %1766 = vmatprep.subr.mxu0 0.0
    %1767 = vmatpush1.msra.mxu0 %v1714
    %1768 = vmatprep.subr.mxu0 0.0
    %1769 = vmatpush1.msra.mxu0 %v1713
    %1770 = vmatprep.subr.mxu0 0.0
    %1771 = vmatpush2.msra.mxu0 0.0
    %1772 = vmatprep.subr.mxu0 0.0
    %1773 = vmatpush2.msra.mxu0 0.0
    %1774 = vmatprep.subr.mxu0 0.0
    %1775 = vmatpush2.msra.mxu0 0.0
    %1776 = vmatprep.subr.mxu0 0.0
    %1777 = vmatpush2.msra.mxu0 0.0
    %1778 = vmatprep.subr.mxu0 0.0
    %1779 = vmatpush2.msra.mxu0 0.0
    %1780 = vmatprep.subr.mxu0 0.0
    %1781 = vmatpush2.msra.mxu0 0.0
    %1782 = vmatprep.subr.mxu0 0.0
    %1783 = vmatpush2.msra.mxu0 0.0
    %1784 = vmatprep.subr.mxu0 0.0
    %1785 = vmatpush2.msra.mxu0 0.0
    %1786 = vmatprep.subr.mxu0 0.0
    %1787 = vmatpush2.msra.mxu0 0.0
    %1788 = vmatprep.subr.mxu0 0.0
    %1789 = vmatpush2.msra.mxu0 0.0
    %1790 = vmatprep.subr.mxu0 0.0
    %1791 = vmatpush2.msra.mxu0 0.0
    %1792 = vmatprep.subr.mxu0 0.0
    %1793 = vmatpush2.msra.mxu0 0.0
    %1794 = vmatprep.subr.mxu0 0.0
    %1795 = vmatpush2.msra.mxu0 0.0
    %1796 = vmatprep.subr.mxu0 0.0
    %1797 = vmatpush2.msra.mxu0 0.0
    %1798 = vmatprep.subr.mxu0 0.0
    %1799 = vmatpush2.msra.mxu0 %v1736
    %1800 = vmatprep.subr.mxu0 0.0
    %1801 = vmatpush2.msra.mxu0 %v1729
    %1802 = vmatprep.mubr.f32.mxu0 %v1331
    %1803 = vmatmul.mubr.f32.gmra.mxu0 %v1148
    %v1804 = vpop.f32.mrf.mxu0
    %v1805 = vadd.f32 0.0, %v1804
    %v1806 = vpop.f32.mrf.mxu0
    %1807 = vmatprep.mubr.f32.mxu0 %v1731
    %1808 = vmatmul.mubr.f32.gmra.mxu0 %v1150
    %v1809 = vpop.f32.mrf.mxu0
    %v1810 = vadd.f32 0.0, %v1809
    %v1811 = vpop.f32.mrf.mxu0
    %1812 = vmatprep.mubr.f32.mxu0 %v1335
    %1813 = vmatmul.mubr.f32.gmra.mxu0 %v1154
    %v1814 = vpop.f32.mrf.mxu0
    %v1815 = vadd.f32 0.0, %v1814
    %v1816 = vpop.f32.mrf.mxu0
    %1817 = vmatprep.mubr.f32.mxu0 %v1733
    %1818 = vmatmul.mubr.f32.gmra.mxu0 %v1156
    %v1819 = vpop.f32.mrf.mxu0
    %v1820 = vadd.f32 0.0, %v1819
    %v1821 = vpop.f32.mrf.mxu0
    %1822 = vdwg.mxu0
    %v1823 = vadd.f32 %v1708, %v1805
    %v1824 = vadd.f32 %v1709, %v1810
    %v1825 = vadd.f32 %v1710, %v1815
    %v1826 = vadd.f32 %v1711, %v1820
    %v1827 = vld [vmem:[%s4] sm:$0x1]
    %v1829 = vlaneseq
    %v1830 = vshrl.u32 %v1829, 7
    %v1831 = vsub.s32 0, %v1830
    %v1832 = vrot.slane %v1827, %v1831
    %v1834 = vadd.f32 %v1823, %v1832
    %v1835 = vadd.f32 %v1824, %v1832
    %v1836 = vadd.f32 %v1825, %v1832
    %v1837 = vadd.f32 %v1826, %v1832
    %v1842 = vrot.slane %v1834, 2
    %v1843 = vrot.slane %v1835, 2
    %v1844 = vsel %vm1188, %v1842, %v1843
    %v1845 = vrot.slane %v1836, 2
    %v1846 = vrot.slane %v1837, 2
    %v1847 = vsel %vm1188, %v1845, %v1846
    %v1852 = vmax.f32 %v1834, %v1844
    %v1853 = vmax.f32 %v1835, %v1843
    %v1854 = vmax.f32 %v1836, %v1847
    %v1855 = vmax.f32 %v1837, %v1846
    %1860 = vrot.lane.b32.xlu0 %v1852, 127
    %v1861 = vpop.permute.xlu0 %1860
    %1862 = vrot.lane.b32.xlu0 %v1853, 127
    %v1863 = vpop.permute.xlu0 %1862
    %1864 = vrot.lane.b32.xlu0 %v1854, 127
    %v1865 = vpop.permute.xlu0 %1864
    %1866 = vrot.lane.b32.xlu0 %v1855, 127
    %v1867 = vpop.permute.xlu0 %1866
    %v1872 = vmax.f32 %v1852, %v1861
    %v1873 = vmax.f32 %v1853, %v1863
    %v1874 = vmax.f32 %v1854, %v1865
    %v1875 = vmax.f32 %v1855, %v1867
    %vm1876 = vcmp.ge.f32.partialorder %v1872, 0.0
    %vm1877 = vcmp.ge.f32.partialorder %v1873, 0.0
    %vm1878 = vcmp.ge.f32.partialorder %v1874, 0.0
    %vm1879 = vcmp.ge.f32.partialorder %v1875, 0.0
    %v1880 = vmul.f32 %v1872, 0.01
    %v1881 = vmul.f32 %v1873, 0.01
    %v1882 = vmul.f32 %v1874, 0.01
    %v1883 = vmul.f32 %v1875, 0.01
    %v1884 = vsel %vm1876, %v1872, %v1880
    %v1885 = vsel %vm1877, %v1873, %v1881
    %v1886 = vsel %vm1878, %v1874, %v1882
    %v1887 = vsel %vm1879, %v1875, %v1883
    %v1888 = vld [vmem:[%s5] sm:$0xff]
    %v1889 = vld [vmem:[%s5 + $0x8] sm:$0xff]
    %v1890 = vld [vmem:[%s5 + $0x10] sm:$0xff]
    %v1891 = vld [vmem:[%s5 + $0x18] sm:$0xff]
    %v1892 = vld [vmem:[%s5 + $0x20] sm:$0xff]
    %v1893 = vld [vmem:[%s5 + $0x28] sm:$0xff]
    %v1894 = vld [vmem:[%s5 + $0x30] sm:$0xff]
    %v1895 = vld [vmem:[%s5 + $0x38] sm:$0xff]
    %v1896 = vld [vmem:[%s5 + $0x40] sm:$0x7f]
    %s1897 = scalar_lea.vmem %s5, 72
    %v1898 = vld [vmem:[%s1897] sm:$0xff]
    %v1899 = vld [vmem:[%s1897 + $0x8] sm:$0xff]
    %v1900 = vld [vmem:[%s1897 + $0x10] sm:$0xff]
    %v1901 = vld [vmem:[%s1897 + $0x18] sm:$0xff]
    %v1902 = vld [vmem:[%s1897 + $0x20] sm:$0xff]
    %v1903 = vld [vmem:[%s1897 + $0x28] sm:$0xff]
    %v1904 = vld [vmem:[%s1897 + $0x30] sm:$0xff]
    %v1905 = vld [vmem:[%s1897 + $0x38] sm:$0xff]
    %v1906 = vld [vmem:[%s1897 + $0x40] sm:$0x7f]
    %v1909 = vrot.slane %v1884, 4
    %v1910 = vrot.slane %v1886, 3
    %vm1911 = vcmask 1041409
    %v1912 = vsel %vm1911, %v1910, %v1909
    %vm1913 = vcmask 580608
    %v1914 = vsel %vm1913, %v1912, 0
    %v1917 = vsel %vm1002, %v1906, 0
    %1919 = vmatprep.subr.mxu0 0.0
    %1920 = vmatpush1.msra.mxu0 0.0
    %1921 = vmatprep.subr.mxu0 0.0
    %1922 = vmatpush1.msra.mxu0 0.0
    %1923 = vmatprep.subr.mxu0 0.0
    %1924 = vmatpush1.msra.mxu0 0.0
    %1925 = vmatprep.subr.mxu0 0.0
    %1926 = vmatpush1.msra.mxu0 0.0
    %1927 = vmatprep.subr.mxu0 0.0
    %1928 = vmatpush1.msra.mxu0 0.0
    %1929 = vmatprep.subr.mxu0 0.0
    %1930 = vmatpush1.msra.mxu0 0.0
    %1931 = vmatprep.subr.mxu0 0.0
    %1932 = vmatpush1.msra.mxu0 0.0
    %1933 = vmatprep.subr.mxu0 0.0
    %1934 = vmatpush1.msra.mxu0 %v1917
    %1935 = vmatprep.subr.mxu0 0.0
    %1936 = vmatpush1.msra.mxu0 %v1905
    %1937 = vmatprep.subr.mxu0 0.0
    %1938 = vmatpush1.msra.mxu0 %v1904
    %1939 = vmatprep.subr.mxu0 0.0
    %1940 = vmatpush1.msra.mxu0 %v1903
    %1941 = vmatprep.subr.mxu0 0.0
    %1942 = vmatpush1.msra.mxu0 %v1902
    %1943 = vmatprep.subr.mxu0 0.0
    %1944 = vmatpush1.msra.mxu0 %v1901
    %1945 = vmatprep.subr.mxu0 0.0
    %1946 = vmatpush1.msra.mxu0 %v1900
    %1947 = vmatprep.subr.mxu0 0.0
    %1948 = vmatpush1.msra.mxu0 %v1899
    %1949 = vmatprep.subr.mxu0 0.0
    %1950 = vmatpush1.msra.mxu0 %v1898
    %1951 = vmatprep.subr.mxu0 0.0
    %1952 = vmatpush2.msra.mxu0 0.0
    %1953 = vmatprep.subr.mxu0 0.0
    %1954 = vmatpush2.msra.mxu0 0.0
    %1955 = vmatprep.subr.mxu0 0.0
    %1956 = vmatpush2.msra.mxu0 0.0
    %1957 = vmatprep.subr.mxu0 0.0
    %1958 = vmatpush2.msra.mxu0 0.0
    %1959 = vmatprep.subr.mxu0 0.0
    %1960 = vmatpush2.msra.mxu0 0.0
    %1961 = vmatprep.subr.mxu0 0.0
    %1962 = vmatpush2.msra.mxu0 0.0
    %1963 = vmatprep.subr.mxu0 0.0
    %1964 = vmatpush2.msra.mxu0 0.0
    %1965 = vmatprep.subr.mxu0 0.0
    %1966 = vmatpush2.msra.mxu0 0.0
    %1967 = vmatprep.subr.mxu0 0.0
    %1968 = vmatpush2.msra.mxu0 0.0
    %1969 = vmatprep.subr.mxu0 0.0
    %1970 = vmatpush2.msra.mxu0 0.0
    %1971 = vmatprep.subr.mxu0 0.0
    %1972 = vmatpush2.msra.mxu0 0.0
    %1973 = vmatprep.subr.mxu0 0.0
    %1974 = vmatpush2.msra.mxu0 0.0
    %1975 = vmatprep.subr.mxu0 0.0
    %1976 = vmatpush2.msra.mxu0 0.0
    %1977 = vmatprep.subr.mxu0 0.0
    %1978 = vmatpush2.msra.mxu0 0.0
    %1979 = vmatprep.subr.mxu0 0.0
    %1980 = vmatpush2.msra.mxu0 0.0
    %1981 = vmatprep.subr.mxu0 0.0
    %1982 = vmatpush2.msra.mxu0 0.0
    %1983 = vmatprep.mubr.f32.mxu0 0.0
    %1984 = vmatmul.mubr.f32.gmra.mxu0 %v1914
    %v1985 = vpop.f32.mrf.mxu0
    %v1986 = vadd.f32 0.0, %v1985
    %v1987 = vpop.f32.mrf.mxu0
    %1988 = vdwg.mxu0
    %v1989 = vrot.slane %v1886, 7
    %v1990 = vsel %vm1911, %v1989, %v1884
    %v1991 = vsel %vm1913, %v1990, 0
    %v1994 = vsel %vm1002, %v1896, 0
    %1996 = vmatprep.subr.mxu0 0.0
    %1997 = vmatpush1.msra.mxu0 0.0
    %1998 = vmatprep.subr.mxu0 0.0
    %1999 = vmatpush1.msra.mxu0 0.0
    %2000 = vmatprep.subr.mxu0 0.0
    %2001 = vmatpush1.msra.mxu0 0.0
    %2002 = vmatprep.subr.mxu0 0.0
    %2003 = vmatpush1.msra.mxu0 0.0
    %2004 = vmatprep.subr.mxu0 0.0
    %2005 = vmatpush1.msra.mxu0 0.0
    %2006 = vmatprep.subr.mxu0 0.0
    %2007 = vmatpush1.msra.mxu0 0.0
    %2008 = vmatprep.subr.mxu0 0.0
    %2009 = vmatpush1.msra.mxu0 0.0
    %2010 = vmatprep.subr.mxu0 0.0
    %2011 = vmatpush1.msra.mxu0 %v1994
    %2012 = vmatprep.subr.mxu0 0.0
    %2013 = vmatpush1.msra.mxu0 %v1895
    %2014 = vmatprep.subr.mxu0 0.0
    %2015 = vmatpush1.msra.mxu0 %v1894
    %2016 = vmatprep.subr.mxu0 0.0
    %2017 = vmatpush1.msra.mxu0 %v1893
    %2018 = vmatprep.subr.mxu0 0.0
    %2019 = vmatpush1.msra.mxu0 %v1892
    %2020 = vmatprep.subr.mxu0 0.0
    %2021 = vmatpush1.msra.mxu0 %v1891
    %2022 = vmatprep.subr.mxu0 0.0
    %2023 = vmatpush1.msra.mxu0 %v1890
    %2024 = vmatprep.subr.mxu0 0.0
    %2025 = vmatpush1.msra.mxu0 %v1889
    %2026 = vmatprep.subr.mxu0 0.0
    %2027 = vmatpush1.msra.mxu0 %v1888
    %2028 = vmatprep.subr.mxu0 0.0
    %2029 = vmatpush2.msra.mxu0 0.0
    %2030 = vmatprep.subr.mxu0 0.0
    %2031 = vmatpush2.msra.mxu0 0.0
    %2032 = vmatprep.subr.mxu0 0.0
    %2033 = vmatpush2.msra.mxu0 0.0
    %2034 = vmatprep.subr.mxu0 0.0
    %2035 = vmatpush2.msra.mxu0 0.0
    %2036 = vmatprep.subr.mxu0 0.0
    %2037 = vmatpush2.msra.mxu0 0.0
    %2038 = vmatprep.subr.mxu0 0.0
    %2039 = vmatpush2.msra.mxu0 0.0
    %2040 = vmatprep.subr.mxu0 0.0
    %2041 = vmatpush2.msra.mxu0 0.0
    %2042 = vmatprep.subr.mxu0 0.0
    %2043 = vmatpush2.msra.mxu0 0.0
    %2044 = vmatprep.subr.mxu0 0.0
    %2045 = vmatpush2.msra.mxu0 0.0
    %2046 = vmatprep.subr.mxu0 0.0
    %2047 = vmatpush2.msra.mxu0 0.0
    %2048 = vmatprep.subr.mxu0 0.0
    %2049 = vmatpush2.msra.mxu0 0.0
    %2050 = vmatprep.subr.mxu0 0.0
    %2051 = vmatpush2.msra.mxu0 0.0
    %2052 = vmatprep.subr.mxu0 0.0
    %2053 = vmatpush2.msra.mxu0 0.0
    %2054 = vmatprep.subr.mxu0 0.0
    %2055 = vmatpush2.msra.mxu0 0.0
    %2056 = vmatprep.subr.mxu0 0.0
    %2057 = vmatpush2.msra.mxu0 0.0
    %2058 = vmatprep.subr.mxu0 0.0
    %2059 = vmatpush2.msra.mxu0 0.0
    %2060 = vmatprep.mubr.f32.mxu0 0.0
    %2061 = vmatmul.mubr.f32.gmra.mxu0 %v1991
    %v2062 = vpop.f32.mrf.mxu0
    %v2063 = vadd.f32 %v1986, %v2062
    %v2064 = vpop.f32.mrf.mxu0
    %2065 = vdwg.mxu0
    %s2066 = scalar_lea.vmem %s5, 144
    %v2067 = vld [vmem:[%s2066] sm:$0xff]
    %v2068 = vld [vmem:[%s2066 + $0x8] sm:$0xff]
    %v2069 = vld [vmem:[%s2066 + $0x10] sm:$0xff]
    %v2070 = vld [vmem:[%s2066 + $0x18] sm:$0xff]
    %v2071 = vld [vmem:[%s2066 + $0x20] sm:$0xff]
    %v2072 = vld [vmem:[%s2066 + $0x28] sm:$0xff]
    %v2073 = vld [vmem:[%s2066 + $0x30] sm:$0xff]
    %v2074 = vld [vmem:[%s2066 + $0x38] sm:$0xff]
    %v2075 = vld [vmem:[%s2066 + $0x40] sm:$0x7f]
    %v2078 = vrot.slane %v1887, 7
    %v2079 = vsel %vm1911, %v2078, %v1885
    %v2080 = vsel %vm1913, %v2079, 0
    %v2083 = vsel %vm1002, %v2075, 0
    %2085 = vmatprep.subr.mxu0 0.0
    %2086 = vmatpush1.msra.mxu0 0.0
    %2087 = vmatprep.subr.mxu0 0.0
    %2088 = vmatpush1.msra.mxu0 0.0
    %2089 = vmatprep.subr.mxu0 0.0
    %2090 = vmatpush1.msra.mxu0 0.0
    %2091 = vmatprep.subr.mxu0 0.0
    %2092 = vmatpush1.msra.mxu0 0.0
    %2093 = vmatprep.subr.mxu0 0.0
    %2094 = vmatpush1.msra.mxu0 0.0
    %2095 = vmatprep.subr.mxu0 0.0
    %2096 = vmatpush1.msra.mxu0 0.0
    %2097 = vmatprep.subr.mxu0 0.0
    %2098 = vmatpush1.msra.mxu0 0.0
    %2099 = vmatprep.subr.mxu0 0.0
    %2100 = vmatpush1.msra.mxu0 %v2083
    %2101 = vmatprep.subr.mxu0 0.0
    %2102 = vmatpush1.msra.mxu0 %v2074
    %2103 = vmatprep.subr.mxu0 0.0
    %2104 = vmatpush1.msra.mxu0 %v2073
    %2105 = vmatprep.subr.mxu0 0.0
    %2106 = vmatpush1.msra.mxu0 %v2072
    %2107 = vmatprep.subr.mxu0 0.0
    %2108 = vmatpush1.msra.mxu0 %v2071
    %2109 = vmatprep.subr.mxu0 0.0
    %2110 = vmatpush1.msra.mxu0 %v2070
    %2111 = vmatprep.subr.mxu0 0.0
    %2112 = vmatpush1.msra.mxu0 %v2069
    %2113 = vmatprep.subr.mxu0 0.0
    %2114 = vmatpush1.msra.mxu0 %v2068
    %2115 = vmatprep.subr.mxu0 0.0
    %2116 = vmatpush1.msra.mxu0 %v2067
    %2117 = vmatprep.subr.mxu0 0.0
    %2118 = vmatpush2.msra.mxu0 0.0
    %2119 = vmatprep.subr.mxu0 0.0
    %2120 = vmatpush2.msra.mxu0 0.0
    %2121 = vmatprep.subr.mxu0 0.0
    %2122 = vmatpush2.msra.mxu0 0.0
    %2123 = vmatprep.subr.mxu0 0.0
    %2124 = vmatpush2.msra.mxu0 0.0
    %2125 = vmatprep.subr.mxu0 0.0
    %2126 = vmatpush2.msra.mxu0 0.0
    %2127 = vmatprep.subr.mxu0 0.0
    %2128 = vmatpush2.msra.mxu0 0.0
    %2129 = vmatprep.subr.mxu0 0.0
    %2130 = vmatpush2.msra.mxu0 0.0
    %2131 = vmatprep.subr.mxu0 0.0
    %2132 = vmatpush2.msra.mxu0 0.0
    %2133 = vmatprep.subr.mxu0 0.0
    %2134 = vmatpush2.msra.mxu0 0.0
    %2135 = vmatprep.subr.mxu0 0.0
    %2136 = vmatpush2.msra.mxu0 0.0
    %2137 = vmatprep.subr.mxu0 0.0
    %2138 = vmatpush2.msra.mxu0 0.0
    %2139 = vmatprep.subr.mxu0 0.0
    %2140 = vmatpush2.msra.mxu0 0.0
    %2141 = vmatprep.subr.mxu0 0.0
    %2142 = vmatpush2.msra.mxu0 0.0
    %2143 = vmatprep.subr.mxu0 0.0
    %2144 = vmatpush2.msra.mxu0 0.0
    %2145 = vmatprep.subr.mxu0 0.0
    %2146 = vmatpush2.msra.mxu0 0.0
    %2147 = vmatprep.subr.mxu0 0.0
    %2148 = vmatpush2.msra.mxu0 0.0
    %2149 = vmatprep.mubr.f32.mxu0 0.0
    %2150 = vmatmul.mubr.f32.gmra.mxu0 %v2080
    %v2151 = vpop.f32.mrf.mxu0
    %v2152 = vadd.f32 0.0, %v2151
    %v2153 = vpop.f32.mrf.mxu0
    %2154 = vdwg.mxu0
    %v2155 = vadd.f32 %v2063, %v2152
    %s2156 = scalar_lea.vmem %s5, 216
    %v2157 = vld [vmem:[%s2156] sm:$0xff]
    %v2158 = vld [vmem:[%s2156 + $0x8] sm:$0xff]
    %v2159 = vld [vmem:[%s2156 + $0x10] sm:$0xff]
    %v2160 = vld [vmem:[%s2156 + $0x18] sm:$0xff]
    %v2161 = vld [vmem:[%s2156 + $0x20] sm:$0xff]
    %v2162 = vld [vmem:[%s2156 + $0x28] sm:$0xff]
    %v2163 = vld [vmem:[%s2156 + $0x30] sm:$0xff]
    %v2164 = vld [vmem:[%s2156 + $0x38] sm:$0xff]
    %v2165 = vld [vmem:[%s2156 + $0x40] sm:$0x7f]
    %v2166 = vrot.slane %v1885, 4
    %v2167 = vrot.slane %v1887, 3
    %v2168 = vsel %vm1911, %v2167, %v2166
    %v2169 = vsel %vm1913, %v2168, 0
    %v2172 = vsel %vm1002, %v2165, 0
    %2174 = vmatprep.subr.mxu0 0.0
    %2175 = vmatpush1.msra.mxu0 0.0
    %2176 = vmatprep.subr.mxu0 0.0
    %2177 = vmatpush1.msra.mxu0 0.0
    %2178 = vmatprep.subr.mxu0 0.0
    %2179 = vmatpush1.msra.mxu0 0.0
    %2180 = vmatprep.subr.mxu0 0.0
    %2181 = vmatpush1.msra.mxu0 0.0
    %2182 = vmatprep.subr.mxu0 0.0
    %2183 = vmatpush1.msra.mxu0 0.0
    %2184 = vmatprep.subr.mxu0 0.0
    %2185 = vmatpush1.msra.mxu0 0.0
    %2186 = vmatprep.subr.mxu0 0.0
    %2187 = vmatpush1.msra.mxu0 0.0
    %2188 = vmatprep.subr.mxu0 0.0
    %2189 = vmatpush1.msra.mxu0 %v2172
    %2190 = vmatprep.subr.mxu0 0.0
    %2191 = vmatpush1.msra.mxu0 %v2164
    %2192 = vmatprep.subr.mxu0 0.0
    %2193 = vmatpush1.msra.mxu0 %v2163
    %2194 = vmatprep.subr.mxu0 0.0
    %2195 = vmatpush1.msra.mxu0 %v2162
    %2196 = vmatprep.subr.mxu0 0.0
    %2197 = vmatpush1.msra.mxu0 %v2161
    %2198 = vmatprep.subr.mxu0 0.0
    %2199 = vmatpush1.msra.mxu0 %v2160
    %2200 = vmatprep.subr.mxu0 0.0
    %2201 = vmatpush1.msra.mxu0 %v2159
    %2202 = vmatprep.subr.mxu0 0.0
    %2203 = vmatpush1.msra.mxu0 %v2158
    %2204 = vmatprep.subr.mxu0 0.0
    %2205 = vmatpush1.msra.mxu0 %v2157
    %2206 = vmatprep.subr.mxu0 0.0
    %2207 = vmatpush2.msra.mxu0 0.0
    %2208 = vmatprep.subr.mxu0 0.0
    %2209 = vmatpush2.msra.mxu0 0.0
    %2210 = vmatprep.subr.mxu0 0.0
    %2211 = vmatpush2.msra.mxu0 0.0
    %2212 = vmatprep.subr.mxu0 0.0
    %2213 = vmatpush2.msra.mxu0 0.0
    %2214 = vmatprep.subr.mxu0 0.0
    %2215 = vmatpush2.msra.mxu0 0.0
    %2216 = vmatprep.subr.mxu0 0.0
    %2217 = vmatpush2.msra.mxu0 0.0
    %2218 = vmatprep.subr.mxu0 0.0
    %2219 = vmatpush2.msra.mxu0 0.0
    %2220 = vmatprep.subr.mxu0 0.0
    %2221 = vmatpush2.msra.mxu0 0.0
    %2222 = vmatprep.subr.mxu0 0.0
    %2223 = vmatpush2.msra.mxu0 0.0
    %2224 = vmatprep.subr.mxu0 0.0
    %2225 = vmatpush2.msra.mxu0 0.0
    %2226 = vmatprep.subr.mxu0 0.0
    %2227 = vmatpush2.msra.mxu0 0.0
    %2228 = vmatprep.subr.mxu0 0.0
    %2229 = vmatpush2.msra.mxu0 0.0
    %2230 = vmatprep.subr.mxu0 0.0
    %2231 = vmatpush2.msra.mxu0 0.0
    %2232 = vmatprep.subr.mxu0 0.0
    %2233 = vmatpush2.msra.mxu0 0.0
    %2234 = vmatprep.subr.mxu0 0.0
    %2235 = vmatpush2.msra.mxu0 0.0
    %2236 = vmatprep.subr.mxu0 0.0
    %2237 = vmatpush2.msra.mxu0 0.0
    %2238 = vmatprep.mubr.f32.mxu0 0.0
    %2239 = vmatmul.mubr.f32.gmra.mxu0 %v2169
    %v2240 = vpop.f32.mrf.mxu0
    %v2241 = vadd.f32 0.0, %v2240
    %v2242 = vpop.f32.mrf.mxu0
    %2243 = vdwg.mxu0
    %v2244 = vadd.f32 %v2155, %v2241
    %v2245 = vld [vmem:[%s6] sm:$0x1]
    %v2247 = vlaneseq
    %v2248 = vshrl.u32 %v2247, 7
    %v2249 = vsub.s32 0, %v2248
    %v2250 = vrot.slane %v2245, %v2249
    %v2252 = vadd.f32 %v2244, %v2250
    %vm2253 = vcmp.ge.f32.partialorder %v2252, 0.0
    %v2254 = vmul.f32 %v2252, 0.01
    %v2255 = vsel %vm2253, %v2252, %v2254
    %v2256 = vld [vmem:[%s7] sm:$0xff]
    %v2257 = vld [vmem:[%s7 + $0x8] sm:$0xff]
    %v2258 = vld [vmem:[%s7 + $0x10] sm:$0xff]
    %v2259 = vld [vmem:[%s7 + $0x18] sm:$0xff]
    %v2260 = vld [vmem:[%s7 + $0x20] sm:$0xff]
    %v2261 = vld [vmem:[%s7 + $0x28] sm:$0xff]
    %v2262 = vld [vmem:[%s7 + $0x30] sm:$0x3f]
    %v2263 = vld [vmem:[%s8] sm:$0x1]
    %v2265 = vlaneseq
    %v2266 = vshrl.u32 %v2265, 7
    %v2267 = vsub.s32 0, %v2266
    %v2268 = vrot.slane %v2263, %v2267
    %vm2270 = vcmask 441344
    %v2272 = vsel %vm2270, %v2255, 0
    %v2275 = vsel %vm1188, %v2262, 0
    %2277 = vmatprep.subr.mxu0 0.0
    %2278 = vmatpush1.msra.mxu0 0.0
    %2279 = vmatprep.subr.mxu0 0.0
    %2280 = vmatpush1.msra.mxu0 0.0
    %2281 = vmatprep.subr.mxu0 0.0
    %2282 = vmatpush1.msra.mxu0 0.0
    %2283 = vmatprep.subr.mxu0 0.0
    %2284 = vmatpush1.msra.mxu0 0.0
    %2285 = vmatprep.subr.mxu0 0.0
    %2286 = vmatpush1.msra.mxu0 0.0
    %2287 = vmatprep.subr.mxu0 0.0
    %2288 = vmatpush1.msra.mxu0 0.0
    %2289 = vmatprep.subr.mxu0 0.0
    %2290 = vmatpush1.msra.mxu0 0.0
    %2291 = vmatprep.subr.mxu0 0.0
    %2292 = vmatpush1.msra.mxu0 0.0
    %2293 = vmatprep.subr.mxu0 0.0
    %2294 = vmatpush1.msra.mxu0 0.0
    %2295 = vmatprep.subr.mxu0 0.0
    %2296 = vmatpush1.msra.mxu0 %v2275
    %2297 = vmatprep.subr.mxu0 0.0
    %2298 = vmatpush1.msra.mxu0 %v2261
    %2299 = vmatprep.subr.mxu0 0.0
    %2300 = vmatpush1.msra.mxu0 %v2260
    %2301 = vmatprep.subr.mxu0 0.0
    %2302 = vmatpush1.msra.mxu0 %v2259
    %2303 = vmatprep.subr.mxu0 0.0
    %2304 = vmatpush1.msra.mxu0 %v2258
    %2305 = vmatprep.subr.mxu0 0.0
    %2306 = vmatpush1.msra.mxu0 %v2257
    %2307 = vmatprep.subr.mxu0 0.0
    %2308 = vmatpush1.msra.mxu0 %v2256
    %2309 = vmatprep.subr.mxu0 0.0
    %2310 = vmatpush2.msra.mxu0 0.0
    %2311 = vmatprep.subr.mxu0 0.0
    %2312 = vmatpush2.msra.mxu0 0.0
    %2313 = vmatprep.subr.mxu0 0.0
    %2314 = vmatpush2.msra.mxu0 0.0
    %2315 = vmatprep.subr.mxu0 0.0
    %2316 = vmatpush2.msra.mxu0 0.0
    %2317 = vmatprep.subr.mxu0 0.0
    %2318 = vmatpush2.msra.mxu0 0.0
    %2319 = vmatprep.subr.mxu0 0.0
    %2320 = vmatpush2.msra.mxu0 0.0
    %2321 = vmatprep.subr.mxu0 0.0
    %2322 = vmatpush2.msra.mxu0 0.0
    %2323 = vmatprep.subr.mxu0 0.0
    %2324 = vmatpush2.msra.mxu0 0.0
    %2325 = vmatprep.subr.mxu0 0.0
    %2326 = vmatpush2.msra.mxu0 0.0
    %2327 = vmatprep.subr.mxu0 0.0
    %2328 = vmatpush2.msra.mxu0 0.0
    %2329 = vmatprep.subr.mxu0 0.0
    %2330 = vmatpush2.msra.mxu0 0.0
    %2331 = vmatprep.subr.mxu0 0.0
    %2332 = vmatpush2.msra.mxu0 0.0
    %2333 = vmatprep.subr.mxu0 0.0
    %2334 = vmatpush2.msra.mxu0 0.0
    %2335 = vmatprep.subr.mxu0 0.0
    %2336 = vmatpush2.msra.mxu0 0.0
    %2337 = vmatprep.subr.mxu0 0.0
    %2338 = vmatpush2.msra.mxu0 0.0
    %2339 = vmatprep.subr.mxu0 0.0
    %2340 = vmatpush2.msra.mxu0 0.0
    %2341 = vmatprep.mubr.f32.mxu0 0.0
    %2342 = vmatmul.mubr.f32.gmra.mxu0 %v2272
    %v2343 = vpop.f32.mrf.mxu0
    %v2344 = vadd.f32 %v2268, %v2343
    %v2345 = vpop.f32.mrf.mxu0
    %2346 = vdwg.mxu0
    %vm2347 = vcmp.ge.f32.partialorder %v2344, 0.0
    %v2348 = vmul.f32 %v2344, 0.01
    %v2349 = vsel %vm2347, %v2344, %v2348
    %v2350 = vld [vmem:[%s9] sm:$0xff]
    %v2351 = vld [vmem:[%s9 + $0x8] sm:$0xff]
    %v2352 = vld [vmem:[%s9 + $0x10] sm:$0xf]
    %v2353 = vld [vmem:[%s10] sm:$0x1]
    %v2355 = vlaneseq
    %v2356 = vshrl.u32 %v2355, 7
    %v2357 = vsub.s32 0, %v2356
    %v2358 = vrot.slane %v2353, %v2357
    %vm2360 = vcmask 162816
    %v2362 = vsel %vm2360, %v2349, 0
    %v2365 = vsel %vm125, %v2352, 0
    %2367 = vmatprep.subr.mxu0 0.0
    %2368 = vmatpush1.msra.mxu0 0.0
    %2369 = vmatprep.subr.mxu0 0.0
    %2370 = vmatpush1.msra.mxu0 0.0
    %2371 = vmatprep.subr.mxu0 0.0
    %2372 = vmatpush1.msra.mxu0 0.0
    %2373 = vmatprep.subr.mxu0 0.0
    %2374 = vmatpush1.msra.mxu0 0.0
    %2375 = vmatprep.subr.mxu0 0.0
    %2376 = vmatpush1.msra.mxu0 0.0
    %2377 = vmatprep.subr.mxu0 0.0
    %2378 = vmatpush1.msra.mxu0 0.0
    %2379 = vmatprep.subr.mxu0 0.0
    %2380 = vmatpush1.msra.mxu0 0.0
    %2381 = vmatprep.subr.mxu0 0.0
    %2382 = vmatpush1.msra.mxu0 0.0
    %2383 = vmatprep.subr.mxu0 0.0
    %2384 = vmatpush1.msra.mxu0 0.0
    %2385 = vmatprep.subr.mxu0 0.0
    %2386 = vmatpush1.msra.mxu0 0.0
    %2387 = vmatprep.subr.mxu0 0.0
    %2388 = vmatpush1.msra.mxu0 0.0
    %2389 = vmatprep.subr.mxu0 0.0
    %2390 = vmatpush1.msra.mxu0 0.0
    %2391 = vmatprep.subr.mxu0 0.0
    %2392 = vmatpush1.msra.mxu0 0.0
    %2393 = vmatprep.subr.mxu0 0.0
    %2394 = vmatpush1.msra.mxu0 %v2365
    %2395 = vmatprep.subr.mxu0 0.0
    %2396 = vmatpush1.msra.mxu0 %v2351
    %2397 = vmatprep.subr.mxu0 0.0
    %2398 = vmatpush1.msra.mxu0 %v2350
    %2399 = vmatprep.subr.mxu0 0.0
    %2400 = vmatpush2.msra.mxu0 0.0
    %2401 = vmatprep.subr.mxu0 0.0
    %2402 = vmatpush2.msra.mxu0 0.0
    %2403 = vmatprep.subr.mxu0 0.0
    %2404 = vmatpush2.msra.mxu0 0.0
    %2405 = vmatprep.subr.mxu0 0.0
    %2406 = vmatpush2.msra.mxu0 0.0
    %2407 = vmatprep.subr.mxu0 0.0
    %2408 = vmatpush2.msra.mxu0 0.0
    %2409 = vmatprep.subr.mxu0 0.0
    %2410 = vmatpush2.msra.mxu0 0.0
    %2411 = vmatprep.subr.mxu0 0.0
    %2412 = vmatpush2.msra.mxu0 0.0
    %2413 = vmatprep.subr.mxu0 0.0
    %2414 = vmatpush2.msra.mxu0 0.0
    %2415 = vmatprep.subr.mxu0 0.0
    %2416 = vmatpush2.msra.mxu0 0.0
    %2417 = vmatprep.subr.mxu0 0.0
    %2418 = vmatpush2.msra.mxu0 0.0
    %2419 = vmatprep.subr.mxu0 0.0
    %2420 = vmatpush2.msra.mxu0 0.0
    %2421 = vmatprep.subr.mxu0 0.0
    %2422 = vmatpush2.msra.mxu0 0.0
    %2423 = vmatprep.subr.mxu0 0.0
    %2424 = vmatpush2.msra.mxu0 0.0
    %2425 = vmatprep.subr.mxu0 0.0
    %2426 = vmatpush2.msra.mxu0 0.0
    %2427 = vmatprep.subr.mxu0 0.0
    %2428 = vmatpush2.msra.mxu0 0.0
    %2429 = vmatprep.subr.mxu0 0.0
    %2430 = vmatpush2.msra.mxu0 0.0
    %2431 = vmatprep.mubr.f32.mxu0 0.0
    %2432 = vmatmul.mubr.f32.gmra.mxu0 %v2362
    %v2433 = vpop.f32.mrf.mxu0
    %v2434 = vadd.f32 %v2358, %v2433
    %v2435 = vpop.f32.mrf.mxu0
    %2436 = vdwg.mxu0
    %vm2437 = vcmask 74752
    %2438 = vst.msk [vmem:[#allocation2] sm:$0x3] %vm2437, %v2434
    // Predicated region
    $region46: #{cnn2_forward.1} parent=1 // pred_check
      _
    $region47: #{cnn2_forward.1} parent=1 // pred_check_branch
      %2440 = sbr.rel (0) target = $region49
    $region48: #{cnn2_forward.1} parent=1 // pred_region
      %s2442 = ssub.s32 32, 32
      %2443 = vsyncadd [#allocation3], %s2442
      %s2445 = sshll.u32 [#allocation2], 4
      %s2446 = int_to_ptr.vmem [resolvable:$true] %s2445
      %2448 = dma.vmem_to_hbm [thread:$0]  %s2446, 32, %s11, [#allocation3]
    $region49: #{cnn2_forward.1} parent=1 // pred_fallthru
      _
    // Predicated region
    $region50: #{cnn2_forward.1} parent=1 // pred_check
      _
    $region51: #{cnn2_forward.1} parent=1 // pred_check_branch
      %2450 = sbr.rel (0) target = $region53
    $region52: #{cnn2_forward.1} parent=1 // pred_region
      %2451 = dma.done [#allocation3], 32
    $region53: #{cnn2_forward.1} parent=1 // pred_fallthru
      _
    %2452 = vsyncpa [#allocation3], 1

</llo_original>
